<compile_context>
chip_gen: v7x
topology: tpu7x:2x2x1
jax: 0.10.0
libtpu: 0.0.40
codegen_flags: <defaults>
</compile_context>

<pallas_src>
import numpy as np
import jax
import jax.numpy as jnp
from jax import lax
from jax.experimental import pallas as pl
from jax.experimental.pallas import tpu as pltpu

# ---------------- configuration (small, consistent with the module) ----------------
B = 2              # batch
IN_CH = 4          # args.vocos.backbone.input_channels
L = 8              # sequence length (number of frames)
DIM = 32           # args.vocos.backbone.dim == args.vocos.head.dim
INTER = 64         # args.vocos.backbone.intermediate_dim
NUM_LAYERS = 2     # args.vocos.backbone.num_layers
N_FFT = 16         # args.vocos.head.n_fft
HOP = 4            # args.vocos.head.hop_length
WIN = N_FFT
N_FREQ = N_FFT // 2 + 1      # 9
OUT_DIM = N_FFT + 2          # 18  (= 2 * N_FREQ)
PAD = (WIN - HOP) // 2       # "same" padding for ISTFT
KSZ = 7                      # conv kernel size
ROWS = B * L                 # flattened (batch-major) row count
AUDIO_LEN = L * HOP          # cropped output length

# packed (1, DIM) vector table layout
ROW_EMB_B, ROW_NORM_W, ROW_NORM_B, ROW_FLN_W, ROW_FLN_B = 0, 1, 2, 3, 4
LAYER_BASE = 5               # per layer: dw_b, ln_w, ln_b, b2, gamma
ROW_HEADB = LAYER_BASE + 5 * NUM_LAYERS      # padded head bias row
N_VEC = ROW_HEADB + 1                        # 16 rows total

_SQRT_HALF = 0.7071067811865476


# ---------------- small in-kernel helpers ----------------
def _layernorm(x, gamma, beta, eps=1e-6):
    # Vocos uses nn.LayerNorm(dim, eps=1e-6) everywhere (backbone.norm, block norms,
    # final_layer_norm).
    mean = jnp.mean(x, axis=-1, keepdims=True)
    xc = x - mean
    var = jnp.mean(xc * xc, axis=-1, keepdims=True)
    return xc * lax.rsqrt(var + eps) * gamma + beta


def _erf(x):
    # TODO(synk): Abramowitz & Stegun 7.1.26 polynomial erf (|err| <= 1.5e-7) instead
    # of exact erf; tiny deviation from torch.nn.GELU() default.  At production sizes
    # the tanh-approx GELU (single EUP tanh) is cheaper if the accuracy budget allows.
    a1, a2, a3, a4, a5 = (0.254829592, -0.284496736, 1.421413741,
                          -1.453152027, 1.061405429)
    p = 0.3275911
    s = jnp.where(x < 0.0, -1.0, 1.0)
    z = jnp.abs(x)
    t = 1.0 / (1.0 + p * z)
    poly = ((((a5 * t + a4) * t + a3) * t + a2) * t + a1) * t
    return s * (1.0 - poly * jnp.exp(-z * z))


def _gelu(x):
    return 0.5 * x * (1.0 + _erf(x * _SQRT_HALF))


# ---------------- the single fused kernel ----------------
def vocos_kernel(xc_ref, we_ref, vt_ref, dww_ref, w1_ref, b1_ref, w2_ref,
                 wh_ref, rowc_ref, basis_ref, audio_ref):
    vt = vt_ref[...]                      # (N_VEC, DIM) packed per-channel vectors
    rowc = rowc_ref[...]                  # (ROWS, 7 + L) tap masks | frame one-hots

    # ---- embed Conv1d(IN_CH -> DIM, k=7, pad=3) as ONE im2col matmul (K = 28) ----
    x = jnp.dot(xc_ref[...], we_ref[...],
                preferred_element_type=jnp.float32) + vt[ROW_EMB_B:ROW_EMB_B + 1, :]
    x = _layernorm(x, vt[ROW_NORM_W:ROW_NORM_W + 1, :], vt[ROW_NORM_B:ROW_NORM_B + 1, :])

    # ---- ConvNeXt blocks (unrolled; activation stays resident in vregs) ----
    for i in range(NUM_LAYERS):
        base = LAYER_BASE + 5 * i
        dw = dww_ref[i]                                           # (7, DIM)
        # depthwise k=7 conv via XLU sublane rolls + boundary masks (no shift matmuls)
        acc = x * dw[3:4, :]                                      # center tap (d = 0)
        for k in range(KSZ):
            if k == 3:
                continue
            shifted = pltpu.roll(x, shift=(3 - k) % ROWS, axis=0)  # row r <- x[r + k-3]
            acc = acc + (shifted * rowc[:, k:k + 1]) * dw[k:k + 1, :]
        acc = acc + vt[base:base + 1, :]                          # dwconv bias
        h = _layernorm(acc, vt[base + 1:base + 2, :], vt[base + 2:base + 3, :])
        h = jnp.dot(h, w1_ref[i], preferred_element_type=jnp.float32) + b1_ref[i]
        h = _gelu(h)
        h = jnp.dot(h, w2_ref[i], preferred_element_type=jnp.float32) + vt[base + 3:base + 4, :]
        x = x + h * vt[base + 4:base + 5, :]                      # layer-scale + residual

    # ---- final LayerNorm + fused (mag | phase) head linear (one matmul) ----
    h = _layernorm(x, vt[ROW_FLN_W:ROW_FLN_W + 1, :], vt[ROW_FLN_B:ROW_FLN_B + 1, :])
    hp = jnp.dot(h, wh_ref[...], preferred_element_type=jnp.float32) \
        + vt[ROW_HEADB:ROW_HEADB + 1, :OUT_DIM]                   # (ROWS, 18)
    logm = hp[:, :N_FREQ]
    ph = hp[:, N_FREQ:]
    mag = jnp.minimum(jnp.exp(logm), 100.0)                       # exp + clip(max=1e2)
    ri = jnp.concatenate([mag * jnp.cos(ph), mag * jnp.sin(ph)], axis=1)   # (ROWS, 18)

    # ---- fused irfft + hann + fold + 1/envelope as ONE basis matmul ----
    # one-hot frame expansion: column block t holds ri for rows of frame t, else 0
    ri_exp = jnp.concatenate([ri * rowc[:, 7 + t:8 + t] for t in range(L)],
                             axis=1)                              # (ROWS, 2*N_FREQ*L)
    # block-sum over the L frames of each batch == batch-major reshape to (B, L*18)
    r_idx = lax.broadcasted_iota(jnp.int32, (B, ROWS), 1)
    b_idx = lax.broadcasted_iota(jnp.int32, (B, ROWS), 0)
    summat = jnp.logical_and(r_idx >= b_idx * L,
                             r_idx < (b_idx + 1) * L).astype(jnp.float32)  # (B, ROWS)
    ri_flat = jnp.dot(summat, ri_exp, preferred_element_type=jnp.float32)  # (B, 144)
    audio_ref[...] = jnp.dot(ri_flat, basis_ref[...],
                             preferred_element_type=jnp.float32)  # (B, L*HOP), one store


# ---------------- constants (built once at init, host-side numpy) ----------------
def build_constants():
    # per-row tap-validity masks (cols 0..6) and frame one-hot selectors (cols 7..7+L-1)
    # for BATCH-major rows r = b*L + t.
    rowc = np.zeros((ROWS, KSZ + L), np.float32)
    for r in range(ROWS):
        t = r % L
        for k in range(KSZ):
            if 0 <= t + k - 3 < L:
                rowc[r, k] = 1.0
        rowc[r, KSZ + t] = 1.0

    # irfft cos/sin basis (backward norm), periodic hann window, fold + envelope,
    # all folded into ONE (2*L*N_FREQ, AUDIO_LEN) matrix: rows [GC_t ; -GS_t] per frame.
    n = np.arange(N_FFT)
    kk = np.arange(N_FREQ)
    ang = 2.0 * np.pi * np.outer(kk, n) / N_FFT
    wk = np.full((N_FREQ, 1), 2.0)
    wk[0, 0] = 1.0
    wk[-1, 0] = 1.0                                          # DC / Nyquist bins
    cb = wk * np.cos(ang) / N_FFT
    sb = wk * np.sin(ang) / N_FFT
    win = 0.5 - 0.5 * np.cos(2.0 * np.pi * np.arange(WIN) / WIN)

    out_size = (L - 1) * HOP + WIN
    env = np.zeros(out_size)
    for t in range(L):
        env[t * HOP:t * HOP + WIN] += win ** 2
    env_c = env[PAD:out_size - PAD]
    assert np.all(env_c > 1e-11)                             # validated ONCE at init

    basis = np.zeros((L * 2 * N_FREQ, AUDIO_LEN), np.float32)
    for t in range(L):
        fold_t = np.zeros((N_FFT, AUDIO_LEN))
        for w in range(N_FFT):
            pos = t * HOP + w - PAD
            if 0 <= pos < AUDIO_LEN:
                fold_t[w, pos] = win[w] / env_c[pos]         # window * fold * (1/env)
        basis[t * 2 * N_FREQ:t * 2 * N_FREQ + N_FREQ] = cb @ fold_t
        basis[t * 2 * N_FREQ + N_FREQ:(t + 1) * 2 * N_FREQ] = -(sb @ fold_t)
    # TODO(synk): at production L this basis is O(L^2); move to a per-frame banded
    # (N_FREQ, WIN) basis + strided overlap-add when the L-grid is added (v7x VMEM).
    return jnp.asarray(rowc), jnp.asarray(basis)


# ---------------- parameters (deterministic, synthetic) ----------------
def init_params(key):
    # TODO(synk): torch uses trunc_normal_(std=0.02); plain normal(std=0.02) used here.
    ks = jax.random.split(key, 4 + NUM_LAYERS)
    params = {
        "embed_w": jax.random.normal(ks[0], (DIM, IN_CH, KSZ), jnp.float32) * 0.02,
        "embed_b": jnp.zeros((DIM,), jnp.float32),
        "norm_w": jnp.ones((DIM,), jnp.float32),
        "norm_b": jnp.zeros((DIM,), jnp.float32),
        "final_ln_w": jnp.ones((DIM,), jnp.float32),
        "final_ln_b": jnp.zeros((DIM,), jnp.float32),
        "out_w": jax.random.normal(ks[1], (DIM, OUT_DIM), jnp.float32) * 0.02,
        "out_b": jnp.zeros((OUT_DIM,), jnp.float32),
    }
    layers = []
    lsv = 1.0 / NUM_LAYERS
    for i in range(NUM_LAYERS):
        lk = jax.random.split(ks[4 + i], 3)
        layers.append({
            "dw_w": jax.random.normal(lk[0], (DIM, KSZ), jnp.float32) * 0.02,   # (dim, k)
            "dw_b": jnp.zeros((DIM,), jnp.float32),
            "ln_w": jnp.ones((DIM,), jnp.float32),
            "ln_b": jnp.zeros((DIM,), jnp.float32),
            "w1": jax.random.normal(lk[1], (DIM, INTER), jnp.float32) * 0.02,   # dim -> inter
            "b1": jnp.zeros((INTER,), jnp.float32),
            "w2": jax.random.normal(lk[2], (INTER, DIM), jnp.float32) * 0.02,   # inter -> dim
            "b2": jnp.zeros((DIM,), jnp.float32),
            "gamma": jnp.full((DIM,), lsv, jnp.float32),
        })
    params["layers"] = layers
    return params


def prepare_model(params):
    """Pack weights ONCE: folded embed matrix, one (N_VEC, DIM) vector table,
    layer-stacked matrices, fused head matrix, fused OLA basis, row masks."""
    layers = params["layers"]

    # packed per-channel vectors (all width DIM; head bias zero-padded to DIM)
    rows = [params["embed_b"], params["norm_w"], params["norm_b"],
            params["final_ln_w"], params["final_ln_b"]]
    for lp in layers:
        rows += [lp["dw_b"], lp["ln_w"], lp["ln_b"], lp["b2"], lp["gamma"]]
    rows.append(jnp.pad(params["out_b"], (0, DIM - OUT_DIM)))
    vec_table = jnp.stack(rows, axis=0)                        # (N_VEC, DIM)

    # embed conv folded for im2col: row k*IN_CH + c, col d  <-  w[d, c, k]
    w_embed = jnp.transpose(params["embed_w"], (2, 1, 0)).reshape(KSZ * IN_CH, DIM)

    dw_w = jnp.stack([jnp.transpose(lp["dw_w"]) for lp in layers], axis=0)   # (NL, 7, DIM)
    w1 = jnp.stack([lp["w1"] for lp in layers], axis=0)                      # (NL, DIM, INTER)
    b1 = jnp.stack([lp["b1"].reshape(1, INTER) for lp in layers], axis=0)    # (NL, 1, INTER)
    w2 = jnp.stack([lp["w2"] for lp in layers], axis=0)                      # (NL, INTER, DIM)

    rowc, basis = build_constants()
    return {
        "w_embed": w_embed,               # (28, DIM)
        "vec_table": vec_table,           # (16, DIM)
        "dw_w": dw_w,
        "w1": w1, "b1": b1, "w2": w2,
        "w_head": params["out_w"],        # (DIM, 2*N_FREQ) fused mag|phase
        "rowc": rowc,                     # (ROWS, 7 + L)
        "basis": basis,                   # (2*L*N_FREQ, AUDIO_LEN)
    }


# ---------------- full forward (jitted; one pallas_call) ----------------
@jax.jit
def vocos_forward(features, model):
    # features: (B, IN_CH, L)  ->  audio (B, L*HOP)
    Bc, C, Lc = features.shape
    # im2col for the k=7 / pad=3 embed conv, BATCH-major rows r = b*L + t
    fp = jnp.pad(features, ((0, 0), (0, 0), (3, 3)))
    taps = jnp.stack([fp[:, :, k:k + Lc] for k in range(KSZ)], axis=0)   # (7, B, C, L)
    im2col = jnp.transpose(taps, (1, 3, 0, 2)).reshape(Bc * Lc, KSZ * C)  # (ROWS, 28)

    vmem = pltpu.MemorySpace.VMEM
    audio = pl.pallas_call(
        vocos_kernel,
        out_shape=jax.ShapeDtypeStruct((Bc, Lc * HOP), jnp.float32),
        in_specs=[pl.BlockSpec(memory_space=vmem) for _ in range(10)],
        out_specs=pl.BlockSpec(memory_space=vmem),
    )(im2col, model["w_embed"], model["vec_table"], model["dw_w"],
      model["w1"], model["b1"], model["w2"], model["w_head"],
      model["rowc"], model["basis"])
    return audio


if __name__ == "__main__":
    key = jax.random.PRNGKey(0)
    pkey, xkey = jax.random.split(key)
    params = init_params(pkey)
    model = prepare_model(params)
    features = jax.random.normal(xkey, (B, IN_CH, L), jnp.float32)

    audio = vocos_forward(features, model)
    audio = jax.block_until_ready(audio)

    assert audio.shape == (B, L * HOP), audio.shape
    assert bool(jnp.all(jnp.isfinite(audio)))
    print("KERNEL_OK")
</pallas_src>

<mosaic_0001>
module attributes {stable_mosaic.version = 11 : i64} {
  func.func @vocos_kernel(%arg0: memref<16x28xf32, #tpu.memory_space<vmem>>, %arg1: memref<28x32xf32, #tpu.memory_space<vmem>>, %arg2: memref<16x32xf32, #tpu.memory_space<vmem>>, %arg3: memref<2x7x32xf32, #tpu.memory_space<vmem>>, %arg4: memref<2x32x64xf32, #tpu.memory_space<vmem>>, %arg5: memref<2x1x64xf32, #tpu.memory_space<vmem>>, %arg6: memref<2x64x32xf32, #tpu.memory_space<vmem>>, %arg7: memref<32x18xf32, #tpu.memory_space<vmem>>, %arg8: memref<16x15xf32, #tpu.memory_space<vmem>>, %arg9: memref<144x32xf32, #tpu.memory_space<vmem>>, %arg10: memref<2x32xf32, #tpu.memory_space<vmem>>) attributes {dimension_semantics = [], scalar_prefetch = 0 : i64, scratch_operands = 0 : i64, tpu.core_type = #tpu.core_type<tc>} {
    %c0 = arith.constant 0 : index
    %c0_0 = arith.constant 0 : index
    %0 = vector.load %arg2[%c0, %c0_0] : memref<16x32xf32, #tpu.memory_space<vmem>>, vector<16x32xf32>
    %c0_1 = arith.constant 0 : index
    %c0_2 = arith.constant 0 : index
    %1 = vector.load %arg8[%c0_1, %c0_2] : memref<16x15xf32, #tpu.memory_space<vmem>>, vector<16x15xf32>
    %c0_3 = arith.constant 0 : index
    %c0_4 = arith.constant 0 : index
    %2 = vector.load %arg0[%c0_3, %c0_4] : memref<16x28xf32, #tpu.memory_space<vmem>>, vector<16x28xf32>
    %c0_5 = arith.constant 0 : index
    %c0_6 = arith.constant 0 : index
    %3 = vector.load %arg1[%c0_5, %c0_6] : memref<28x32xf32, #tpu.memory_space<vmem>>, vector<28x32xf32>
    %cst = arith.constant dense<0.000000e+00> : vector<16x32xf32>
    %4 = tpu.matmul %2, %3, %cst {dimension_numbers = #tpu.dot_dimension_numbers<[1], [0], [0], [1], [0, 0, 1, 1], [], []>} : vector<16x28xf32>, vector<28x32xf32>, vector<16x32xf32> -> vector<16x32xf32>
    %5 = vector.extract_strided_slice %0 {offsets = [0, 0], sizes = [1, 32], strides = [1, 1]} : vector<16x32xf32> to vector<1x32xf32>
    %6 = vector.broadcast %5 : vector<1x32xf32> to vector<16x32xf32>
    %7 = arith.addf %4, %6 : vector<16x32xf32>
    %8 = vector.extract_strided_slice %0 {offsets = [1, 0], sizes = [1, 32], strides = [1, 1]} : vector<16x32xf32> to vector<1x32xf32>
    %9 = vector.extract_strided_slice %0 {offsets = [2, 0], sizes = [1, 32], strides = [1, 1]} : vector<16x32xf32> to vector<1x32xf32>
    %cst_7 = arith.constant dense<0.000000e+00> : vector<16xf32>
    %10 = vector.multi_reduction <add>, %7, %cst_7 [1] : vector<16x32xf32> to vector<16xf32>
    %11 = vector.shape_cast %10 : vector<16xf32> to vector<16x1xf32>
    %cst_8 = arith.constant 3.200000e+01 : f32
    %12 = vector.broadcast %cst_8 : f32 to vector<16x1xf32>
    %13 = arith.divf %11, %12 : vector<16x1xf32>
    %14 = vector.broadcast %13 : vector<16x1xf32> to vector<16x32xf32>
    %15 = arith.subf %7, %14 : vector<16x32xf32>
    %16 = arith.mulf %15, %15 : vector<16x32xf32>
    %cst_9 = arith.constant dense<0.000000e+00> : vector<16xf32>
    %17 = vector.multi_reduction <add>, %16, %cst_9 [1] : vector<16x32xf32> to vector<16xf32>
    %18 = vector.shape_cast %17 : vector<16xf32> to vector<16x1xf32>
    %cst_10 = arith.constant 3.200000e+01 : f32
    %19 = vector.broadcast %cst_10 : f32 to vector<16x1xf32>
    %20 = arith.divf %18, %19 : vector<16x1xf32>
    %cst_11 = arith.constant 9.99999997E-7 : f32
    %21 = vector.broadcast %cst_11 : f32 to vector<16x1xf32>
    %22 = arith.addf %20, %21 : vector<16x1xf32>
    %23 = math.rsqrt %22 : vector<16x1xf32>
    %24 = vector.broadcast %23 : vector<16x1xf32> to vector<16x32xf32>
    %25 = arith.mulf %15, %24 : vector<16x32xf32>
    %26 = vector.broadcast %8 : vector<1x32xf32> to vector<16x32xf32>
    %27 = arith.mulf %25, %26 : vector<16x32xf32>
    %28 = vector.broadcast %9 : vector<1x32xf32> to vector<16x32xf32>
    %29 = arith.addf %27, %28 : vector<16x32xf32>
    %c0_12 = arith.constant 0 : index
    %c0_13 = arith.constant 0 : index
    %c0_14 = arith.constant 0 : index
    %30 = vector.load %arg3[%c0_12, %c0_13, %c0_14] : memref<2x7x32xf32, #tpu.memory_space<vmem>>, vector<1x7x32xf32>
    %31 = vector.shape_cast %30 : vector<1x7x32xf32> to vector<7x32xf32>
    %32 = vector.extract_strided_slice %31 {offsets = [3, 0], sizes = [1, 32], strides = [1, 1]} : vector<7x32xf32> to vector<1x32xf32>
    %33 = vector.broadcast %32 : vector<1x32xf32> to vector<16x32xf32>
    %34 = arith.mulf %29, %33 : vector<16x32xf32>
    %c3_i32 = arith.constant 3 : i32
    %35 = tpu.dynamic_rotate %29 by %c3_i32 dim 0 : vector<16x32xf32>, i32 -> vector<16x32xf32>
    %36 = vector.extract_strided_slice %1 {offsets = [0, 0], sizes = [16, 1], strides = [1, 1]} : vector<16x15xf32> to vector<16x1xf32>
    %37 = vector.broadcast %36 : vector<16x1xf32> to vector<16x32xf32>
    %38 = arith.mulf %35, %37 : vector<16x32xf32>
    %39 = vector.extract_strided_slice %31 {offsets = [0, 0], sizes = [1, 32], strides = [1, 1]} : vector<7x32xf32> to vector<1x32xf32>
    %40 = vector.broadcast %39 : vector<1x32xf32> to vector<16x32xf32>
    %41 = arith.mulf %38, %40 : vector<16x32xf32>
    %42 = arith.addf %34, %41 : vector<16x32xf32>
    %c2_i32 = arith.constant 2 : i32
    %43 = tpu.dynamic_rotate %29 by %c2_i32 dim 0 : vector<16x32xf32>, i32 -> vector<16x32xf32>
    %44 = vector.extract_strided_slice %1 {offsets = [0, 1], sizes = [16, 1], strides = [1, 1]} : vector<16x15xf32> to vector<16x1xf32>
    %45 = vector.broadcast %44 : vector<16x1xf32> to vector<16x32xf32>
    %46 = arith.mulf %43, %45 : vector<16x32xf32>
    %47 = vector.extract_strided_slice %31 {offsets = [1, 0], sizes = [1, 32], strides = [1, 1]} : vector<7x32xf32> to vector<1x32xf32>
    %48 = vector.broadcast %47 : vector<1x32xf32> to vector<16x32xf32>
    %49 = arith.mulf %46, %48 : vector<16x32xf32>
    %50 = arith.addf %42, %49 : vector<16x32xf32>
    %c1_i32 = arith.constant 1 : i32
    %51 = tpu.dynamic_rotate %29 by %c1_i32 dim 0 : vector<16x32xf32>, i32 -> vector<16x32xf32>
    %52 = vector.extract_strided_slice %1 {offsets = [0, 2], sizes = [16, 1], strides = [1, 1]} : vector<16x15xf32> to vector<16x1xf32>
    %53 = vector.broadcast %52 : vector<16x1xf32> to vector<16x32xf32>
    %54 = arith.mulf %51, %53 : vector<16x32xf32>
    %55 = vector.extract_strided_slice %31 {offsets = [2, 0], sizes = [1, 32], strides = [1, 1]} : vector<7x32xf32> to vector<1x32xf32>
    %56 = vector.broadcast %55 : vector<1x32xf32> to vector<16x32xf32>
    %57 = arith.mulf %54, %56 : vector<16x32xf32>
    %58 = arith.addf %50, %57 : vector<16x32xf32>
    %c15_i32 = arith.constant 15 : i32
    %59 = tpu.dynamic_rotate %29 by %c15_i32 dim 0 : vector<16x32xf32>, i32 -> vector<16x32xf32>
    %60 = vector.extract_strided_slice %1 {offsets = [0, 4], sizes = [16, 1], strides = [1, 1]} : vector<16x15xf32> to vector<16x1xf32>
    %61 = vector.broadcast %60 : vector<16x1xf32> to vector<16x32xf32>
    %62 = arith.mulf %59, %61 : vector<16x32xf32>
    %63 = vector.extract_strided_slice %31 {offsets = [4, 0], sizes = [1, 32], strides = [1, 1]} : vector<7x32xf32> to vector<1x32xf32>
    %64 = vector.broadcast %63 : vector<1x32xf32> to vector<16x32xf32>
    %65 = arith.mulf %62, %64 : vector<16x32xf32>
    %66 = arith.addf %58, %65 : vector<16x32xf32>
    %c14_i32 = arith.constant 14 : i32
    %67 = tpu.dynamic_rotate %29 by %c14_i32 dim 0 : vector<16x32xf32>, i32 -> vector<16x32xf32>
    %68 = vector.extract_strided_slice %1 {offsets = [0, 5], sizes = [16, 1], strides = [1, 1]} : vector<16x15xf32> to vector<16x1xf32>
    %69 = vector.broadcast %68 : vector<16x1xf32> to vector<16x32xf32>
    %70 = arith.mulf %67, %69 : vector<16x32xf32>
    %71 = vector.extract_strided_slice %31 {offsets = [5, 0], sizes = [1, 32], strides = [1, 1]} : vector<7x32xf32> to vector<1x32xf32>
    %72 = vector.broadcast %71 : vector<1x32xf32> to vector<16x32xf32>
    %73 = arith.mulf %70, %72 : vector<16x32xf32>
    %74 = arith.addf %66, %73 : vector<16x32xf32>
    %c13_i32 = arith.constant 13 : i32
    %75 = tpu.dynamic_rotate %29 by %c13_i32 dim 0 : vector<16x32xf32>, i32 -> vector<16x32xf32>
    %76 = vector.extract_strided_slice %1 {offsets = [0, 6], sizes = [16, 1], strides = [1, 1]} : vector<16x15xf32> to vector<16x1xf32>
    %77 = vector.broadcast %76 : vector<16x1xf32> to vector<16x32xf32>
    %78 = arith.mulf %75, %77 : vector<16x32xf32>
    %79 = vector.extract_strided_slice %31 {offsets = [6, 0], sizes = [1, 32], strides = [1, 1]} : vector<7x32xf32> to vector<1x32xf32>
    %80 = vector.broadcast %79 : vector<1x32xf32> to vector<16x32xf32>
    %81 = arith.mulf %78, %80 : vector<16x32xf32>
    %82 = arith.addf %74, %81 : vector<16x32xf32>
    %83 = vector.extract_strided_slice %0 {offsets = [5, 0], sizes = [1, 32], strides = [1, 1]} : vector<16x32xf32> to vector<1x32xf32>
    %84 = vector.broadcast %83 : vector<1x32xf32> to vector<16x32xf32>
    %85 = arith.addf %82, %84 : vector<16x32xf32>
    %86 = vector.extract_strided_slice %0 {offsets = [6, 0], sizes = [1, 32], strides = [1, 1]} : vector<16x32xf32> to vector<1x32xf32>
    %87 = vector.extract_strided_slice %0 {offsets = [7, 0], sizes = [1, 32], strides = [1, 1]} : vector<16x32xf32> to vector<1x32xf32>
    %cst_15 = arith.constant dense<0.000000e+00> : vector<16xf32>
    %88 = vector.multi_reduction <add>, %85, %cst_15 [1] : vector<16x32xf32> to vector<16xf32>
    %89 = vector.shape_cast %88 : vector<16xf32> to vector<16x1xf32>
    %cst_16 = arith.constant 3.200000e+01 : f32
    %90 = vector.broadcast %cst_16 : f32 to vector<16x1xf32>
    %91 = arith.divf %89, %90 : vector<16x1xf32>
    %92 = vector.broadcast %91 : vector<16x1xf32> to vector<16x32xf32>
    %93 = arith.subf %85, %92 : vector<16x32xf32>
    %94 = arith.mulf %93, %93 : vector<16x32xf32>
    %cst_17 = arith.constant dense<0.000000e+00> : vector<16xf32>
    %95 = vector.multi_reduction <add>, %94, %cst_17 [1] : vector<16x32xf32> to vector<16xf32>
    %96 = vector.shape_cast %95 : vector<16xf32> to vector<16x1xf32>
    %cst_18 = arith.constant 3.200000e+01 : f32
    %97 = vector.broadcast %cst_18 : f32 to vector<16x1xf32>
    %98 = arith.divf %96, %97 : vector<16x1xf32>
    %cst_19 = arith.constant 9.99999997E-7 : f32
    %99 = vector.broadcast %cst_19 : f32 to vector<16x1xf32>
    %100 = arith.addf %98, %99 : vector<16x1xf32>
    %101 = math.rsqrt %100 : vector<16x1xf32>
    %102 = vector.broadcast %101 : vector<16x1xf32> to vector<16x32xf32>
    %103 = arith.mulf %93, %102 : vector<16x32xf32>
    %104 = vector.broadcast %86 : vector<1x32xf32> to vector<16x32xf32>
    %105 = arith.mulf %103, %104 : vector<16x32xf32>
    %106 = vector.broadcast %87 : vector<1x32xf32> to vector<16x32xf32>
    %107 = arith.addf %105, %106 : vector<16x32xf32>
    %c0_20 = arith.constant 0 : index
    %c0_21 = arith.constant 0 : index
    %c0_22 = arith.constant 0 : index
    %108 = vector.load %arg4[%c0_20, %c0_21, %c0_22] : memref<2x32x64xf32, #tpu.memory_space<vmem>>, vector<1x32x64xf32>
    %109 = vector.shape_cast %108 : vector<1x32x64xf32> to vector<32x64xf32>
    %cst_23 = arith.constant dense<0.000000e+00> : vector<16x64xf32>
    %110 = tpu.matmul %107, %109, %cst_23 {dimension_numbers = #tpu.dot_dimension_numbers<[1], [0], [0], [1], [0, 0, 1, 1], [], []>} : vector<16x32xf32>, vector<32x64xf32>, vector<16x64xf32> -> vector<16x64xf32>
    %c0_24 = arith.constant 0 : index
    %c0_25 = arith.constant 0 : index
    %c0_26 = arith.constant 0 : index
    %111 = vector.load %arg5[%c0_24, %c0_25, %c0_26] : memref<2x1x64xf32, #tpu.memory_space<vmem>>, vector<1x1x64xf32>
    %112 = vector.shape_cast %111 : vector<1x1x64xf32> to vector<1x64xf32>
    %113 = vector.broadcast %112 : vector<1x64xf32> to vector<16x64xf32>
    %114 = arith.addf %110, %113 : vector<16x64xf32>
    %cst_27 = arith.constant 5.000000e-01 : f32
    %115 = vector.broadcast %cst_27 : f32 to vector<16x64xf32>
    %116 = arith.mulf %115, %114 : vector<16x64xf32>
    %cst_28 = arith.constant 0.707106769 : f32
    %117 = vector.broadcast %cst_28 : f32 to vector<16x64xf32>
    %118 = arith.mulf %114, %117 : vector<16x64xf32>
    %cst_29 = arith.constant 0.000000e+00 : f32
    %119 = vector.broadcast %cst_29 : f32 to vector<16x64xf32>
    %120 = arith.cmpf olt, %118, %119 : vector<16x64xf32>
    %cst_30 = arith.constant -1.000000e+00 : f32
    %cst_31 = arith.constant 1.000000e+00 : f32
    %121 = vector.broadcast %cst_30 : f32 to vector<16x64xf32>
    %122 = vector.broadcast %cst_31 : f32 to vector<16x64xf32>
    %123 = arith.select %120, %121, %122 : vector<16x64xi1>, vector<16x64xf32>
    %124 = math.absf %118 : vector<16x64xf32>
    %cst_32 = arith.constant 0.327591091 : f32
    %125 = vector.broadcast %cst_32 : f32 to vector<16x64xf32>
    %126 = arith.mulf %125, %124 : vector<16x64xf32>
    %cst_33 = arith.constant 1.000000e+00 : f32
    %127 = vector.broadcast %cst_33 : f32 to vector<16x64xf32>
    %128 = arith.addf %127, %126 : vector<16x64xf32>
    %cst_34 = arith.constant 1.000000e+00 : f32
    %129 = vector.broadcast %cst_34 : f32 to vector<16x64xf32>
    %130 = arith.divf %129, %128 : vector<16x64xf32>
    %cst_35 = arith.constant 1.06140542 : f32
    %131 = vector.broadcast %cst_35 : f32 to vector<16x64xf32>
    %132 = arith.mulf %131, %130 : vector<16x64xf32>
    %cst_36 = arith.constant -1.45315206 : f32
    %133 = vector.broadcast %cst_36 : f32 to vector<16x64xf32>
    %134 = arith.addf %132, %133 : vector<16x64xf32>
    %135 = arith.mulf %134, %130 : vector<16x64xf32>
    %cst_37 = arith.constant 1.42141378 : f32
    %136 = vector.broadcast %cst_37 : f32 to vector<16x64xf32>
    %137 = arith.addf %135, %136 : vector<16x64xf32>
    %138 = arith.mulf %137, %130 : vector<16x64xf32>
    %cst_38 = arith.constant -0.284496725 : f32
    %139 = vector.broadcast %cst_38 : f32 to vector<16x64xf32>
    %140 = arith.addf %138, %139 : vector<16x64xf32>
    %141 = arith.mulf %140, %130 : vector<16x64xf32>
    %cst_39 = arith.constant 0.254829586 : f32
    %142 = vector.broadcast %cst_39 : f32 to vector<16x64xf32>
    %143 = arith.addf %141, %142 : vector<16x64xf32>
    %144 = arith.mulf %143, %130 : vector<16x64xf32>
    %cst_40 = arith.constant 0.000000e+00 : f32
    %145 = vector.broadcast %cst_40 : f32 to vector<16x64xf32>
    %146 = arith.subf %145, %124 : vector<16x64xf32>
    %147 = arith.mulf %146, %124 : vector<16x64xf32>
    %148 = math.exp %147 : vector<16x64xf32>
    %149 = arith.mulf %144, %148 : vector<16x64xf32>
    %cst_41 = arith.constant 1.000000e+00 : f32
    %150 = vector.broadcast %cst_41 : f32 to vector<16x64xf32>
    %151 = arith.subf %150, %149 : vector<16x64xf32>
    %152 = arith.mulf %123, %151 : vector<16x64xf32>
    %cst_42 = arith.constant 1.000000e+00 : f32
    %153 = vector.broadcast %cst_42 : f32 to vector<16x64xf32>
    %154 = arith.addf %153, %152 : vector<16x64xf32>
    %155 = arith.mulf %116, %154 : vector<16x64xf32>
    %c0_43 = arith.constant 0 : index
    %c0_44 = arith.constant 0 : index
    %c0_45 = arith.constant 0 : index
    %156 = vector.load %arg6[%c0_43, %c0_44, %c0_45] : memref<2x64x32xf32, #tpu.memory_space<vmem>>, vector<1x64x32xf32>
    %157 = vector.shape_cast %156 : vector<1x64x32xf32> to vector<64x32xf32>
    %cst_46 = arith.constant dense<0.000000e+00> : vector<16x32xf32>
    %158 = tpu.matmul %155, %157, %cst_46 {dimension_numbers = #tpu.dot_dimension_numbers<[1], [0], [0], [1], [0, 0, 1, 1], [], []>} : vector<16x64xf32>, vector<64x32xf32>, vector<16x32xf32> -> vector<16x32xf32>
    %159 = vector.extract_strided_slice %0 {offsets = [8, 0], sizes = [1, 32], strides = [1, 1]} : vector<16x32xf32> to vector<1x32xf32>
    %160 = vector.broadcast %159 : vector<1x32xf32> to vector<16x32xf32>
    %161 = arith.addf %158, %160 : vector<16x32xf32>
    %162 = vector.extract_strided_slice %0 {offsets = [9, 0], sizes = [1, 32], strides = [1, 1]} : vector<16x32xf32> to vector<1x32xf32>
    %163 = vector.broadcast %162 : vector<1x32xf32> to vector<16x32xf32>
    %164 = arith.mulf %161, %163 : vector<16x32xf32>
    %165 = arith.addf %29, %164 : vector<16x32xf32>
    %c1 = arith.constant 1 : index
    %c0_47 = arith.constant 0 : index
    %c0_48 = arith.constant 0 : index
    %166 = vector.load %arg3[%c1, %c0_47, %c0_48] : memref<2x7x32xf32, #tpu.memory_space<vmem>>, vector<1x7x32xf32>
    %167 = vector.shape_cast %166 : vector<1x7x32xf32> to vector<7x32xf32>
    %168 = vector.extract_strided_slice %167 {offsets = [3, 0], sizes = [1, 32], strides = [1, 1]} : vector<7x32xf32> to vector<1x32xf32>
    %169 = vector.broadcast %168 : vector<1x32xf32> to vector<16x32xf32>
    %170 = arith.mulf %165, %169 : vector<16x32xf32>
    %c3_i32_49 = arith.constant 3 : i32
    %171 = tpu.dynamic_rotate %165 by %c3_i32_49 dim 0 : vector<16x32xf32>, i32 -> vector<16x32xf32>
    %172 = vector.extract_strided_slice %1 {offsets = [0, 0], sizes = [16, 1], strides = [1, 1]} : vector<16x15xf32> to vector<16x1xf32>
    %173 = vector.broadcast %172 : vector<16x1xf32> to vector<16x32xf32>
    %174 = arith.mulf %171, %173 : vector<16x32xf32>
    %175 = vector.extract_strided_slice %167 {offsets = [0, 0], sizes = [1, 32], strides = [1, 1]} : vector<7x32xf32> to vector<1x32xf32>
    %176 = vector.broadcast %175 : vector<1x32xf32> to vector<16x32xf32>
    %177 = arith.mulf %174, %176 : vector<16x32xf32>
    %178 = arith.addf %170, %177 : vector<16x32xf32>
    %c2_i32_50 = arith.constant 2 : i32
    %179 = tpu.dynamic_rotate %165 by %c2_i32_50 dim 0 : vector<16x32xf32>, i32 -> vector<16x32xf32>
    %180 = vector.extract_strided_slice %1 {offsets = [0, 1], sizes = [16, 1], strides = [1, 1]} : vector<16x15xf32> to vector<16x1xf32>
    %181 = vector.broadcast %180 : vector<16x1xf32> to vector<16x32xf32>
    %182 = arith.mulf %179, %181 : vector<16x32xf32>
    %183 = vector.extract_strided_slice %167 {offsets = [1, 0], sizes = [1, 32], strides = [1, 1]} : vector<7x32xf32> to vector<1x32xf32>
    %184 = vector.broadcast %183 : vector<1x32xf32> to vector<16x32xf32>
    %185 = arith.mulf %182, %184 : vector<16x32xf32>
    %186 = arith.addf %178, %185 : vector<16x32xf32>
    %c1_i32_51 = arith.constant 1 : i32
    %187 = tpu.dynamic_rotate %165 by %c1_i32_51 dim 0 : vector<16x32xf32>, i32 -> vector<16x32xf32>
    %188 = vector.extract_strided_slice %1 {offsets = [0, 2], sizes = [16, 1], strides = [1, 1]} : vector<16x15xf32> to vector<16x1xf32>
    %189 = vector.broadcast %188 : vector<16x1xf32> to vector<16x32xf32>
    %190 = arith.mulf %187, %189 : vector<16x32xf32>
    %191 = vector.extract_strided_slice %167 {offsets = [2, 0], sizes = [1, 32], strides = [1, 1]} : vector<7x32xf32> to vector<1x32xf32>
    %192 = vector.broadcast %191 : vector<1x32xf32> to vector<16x32xf32>
    %193 = arith.mulf %190, %192 : vector<16x32xf32>
    %194 = arith.addf %186, %193 : vector<16x32xf32>
    %c15_i32_52 = arith.constant 15 : i32
    %195 = tpu.dynamic_rotate %165 by %c15_i32_52 dim 0 : vector<16x32xf32>, i32 -> vector<16x32xf32>
    %196 = vector.extract_strided_slice %1 {offsets = [0, 4], sizes = [16, 1], strides = [1, 1]} : vector<16x15xf32> to vector<16x1xf32>
    %197 = vector.broadcast %196 : vector<16x1xf32> to vector<16x32xf32>
    %198 = arith.mulf %195, %197 : vector<16x32xf32>
    %199 = vector.extract_strided_slice %167 {offsets = [4, 0], sizes = [1, 32], strides = [1, 1]} : vector<7x32xf32> to vector<1x32xf32>
    %200 = vector.broadcast %199 : vector<1x32xf32> to vector<16x32xf32>
    %201 = arith.mulf %198, %200 : vector<16x32xf32>
    %202 = arith.addf %194, %201 : vector<16x32xf32>
    %c14_i32_53 = arith.constant 14 : i32
    %203 = tpu.dynamic_rotate %165 by %c14_i32_53 dim 0 : vector<16x32xf32>, i32 -> vector<16x32xf32>
    %204 = vector.extract_strided_slice %1 {offsets = [0, 5], sizes = [16, 1], strides = [1, 1]} : vector<16x15xf32> to vector<16x1xf32>
    %205 = vector.broadcast %204 : vector<16x1xf32> to vector<16x32xf32>
    %206 = arith.mulf %203, %205 : vector<16x32xf32>
    %207 = vector.extract_strided_slice %167 {offsets = [5, 0], sizes = [1, 32], strides = [1, 1]} : vector<7x32xf32> to vector<1x32xf32>
    %208 = vector.broadcast %207 : vector<1x32xf32> to vector<16x32xf32>
    %209 = arith.mulf %206, %208 : vector<16x32xf32>
    %210 = arith.addf %202, %209 : vector<16x32xf32>
    %c13_i32_54 = arith.constant 13 : i32
    %211 = tpu.dynamic_rotate %165 by %c13_i32_54 dim 0 : vector<16x32xf32>, i32 -> vector<16x32xf32>
    %212 = vector.extract_strided_slice %1 {offsets = [0, 6], sizes = [16, 1], strides = [1, 1]} : vector<16x15xf32> to vector<16x1xf32>
    %213 = vector.broadcast %212 : vector<16x1xf32> to vector<16x32xf32>
    %214 = arith.mulf %211, %213 : vector<16x32xf32>
    %215 = vector.extract_strided_slice %167 {offsets = [6, 0], sizes = [1, 32], strides = [1, 1]} : vector<7x32xf32> to vector<1x32xf32>
    %216 = vector.broadcast %215 : vector<1x32xf32> to vector<16x32xf32>
    %217 = arith.mulf %214, %216 : vector<16x32xf32>
    %218 = arith.addf %210, %217 : vector<16x32xf32>
    %219 = vector.extract_strided_slice %0 {offsets = [10, 0], sizes = [1, 32], strides = [1, 1]} : vector<16x32xf32> to vector<1x32xf32>
    %220 = vector.broadcast %219 : vector<1x32xf32> to vector<16x32xf32>
    %221 = arith.addf %218, %220 : vector<16x32xf32>
    %222 = vector.extract_strided_slice %0 {offsets = [11, 0], sizes = [1, 32], strides = [1, 1]} : vector<16x32xf32> to vector<1x32xf32>
    %223 = vector.extract_strided_slice %0 {offsets = [12, 0], sizes = [1, 32], strides = [1, 1]} : vector<16x32xf32> to vector<1x32xf32>
    %cst_55 = arith.constant dense<0.000000e+00> : vector<16xf32>
    %224 = vector.multi_reduction <add>, %221, %cst_55 [1] : vector<16x32xf32> to vector<16xf32>
    %225 = vector.shape_cast %224 : vector<16xf32> to vector<16x1xf32>
    %cst_56 = arith.constant 3.200000e+01 : f32
    %226 = vector.broadcast %cst_56 : f32 to vector<16x1xf32>
    %227 = arith.divf %225, %226 : vector<16x1xf32>
    %228 = vector.broadcast %227 : vector<16x1xf32> to vector<16x32xf32>
    %229 = arith.subf %221, %228 : vector<16x32xf32>
    %230 = arith.mulf %229, %229 : vector<16x32xf32>
    %cst_57 = arith.constant dense<0.000000e+00> : vector<16xf32>
    %231 = vector.multi_reduction <add>, %230, %cst_57 [1] : vector<16x32xf32> to vector<16xf32>
    %232 = vector.shape_cast %231 : vector<16xf32> to vector<16x1xf32>
    %cst_58 = arith.constant 3.200000e+01 : f32
    %233 = vector.broadcast %cst_58 : f32 to vector<16x1xf32>
    %234 = arith.divf %232, %233 : vector<16x1xf32>
    %cst_59 = arith.constant 9.99999997E-7 : f32
    %235 = vector.broadcast %cst_59 : f32 to vector<16x1xf32>
    %236 = arith.addf %234, %235 : vector<16x1xf32>
    %237 = math.rsqrt %236 : vector<16x1xf32>
    %238 = vector.broadcast %237 : vector<16x1xf32> to vector<16x32xf32>
    %239 = arith.mulf %229, %238 : vector<16x32xf32>
    %240 = vector.broadcast %222 : vector<1x32xf32> to vector<16x32xf32>
    %241 = arith.mulf %239, %240 : vector<16x32xf32>
    %242 = vector.broadcast %223 : vector<1x32xf32> to vector<16x32xf32>
    %243 = arith.addf %241, %242 : vector<16x32xf32>
    %c1_60 = arith.constant 1 : index
    %c0_61 = arith.constant 0 : index
    %c0_62 = arith.constant 0 : index
    %244 = vector.load %arg4[%c1_60, %c0_61, %c0_62] : memref<2x32x64xf32, #tpu.memory_space<vmem>>, vector<1x32x64xf32>
    %245 = vector.shape_cast %244 : vector<1x32x64xf32> to vector<32x64xf32>
    %cst_63 = arith.constant dense<0.000000e+00> : vector<16x64xf32>
    %246 = tpu.matmul %243, %245, %cst_63 {dimension_numbers = #tpu.dot_dimension_numbers<[1], [0], [0], [1], [0, 0, 1, 1], [], []>} : vector<16x32xf32>, vector<32x64xf32>, vector<16x64xf32> -> vector<16x64xf32>
    %c1_64 = arith.constant 1 : index
    %c0_65 = arith.constant 0 : index
    %c0_66 = arith.constant 0 : index
    %247 = vector.load %arg5[%c1_64, %c0_65, %c0_66] : memref<2x1x64xf32, #tpu.memory_space<vmem>>, vector<1x1x64xf32>
    %248 = vector.shape_cast %247 : vector<1x1x64xf32> to vector<1x64xf32>
    %249 = vector.broadcast %248 : vector<1x64xf32> to vector<16x64xf32>
    %250 = arith.addf %246, %249 : vector<16x64xf32>
    %cst_67 = arith.constant 5.000000e-01 : f32
    %251 = vector.broadcast %cst_67 : f32 to vector<16x64xf32>
    %252 = arith.mulf %251, %250 : vector<16x64xf32>
    %cst_68 = arith.constant 0.707106769 : f32
    %253 = vector.broadcast %cst_68 : f32 to vector<16x64xf32>
    %254 = arith.mulf %250, %253 : vector<16x64xf32>
    %cst_69 = arith.constant 0.000000e+00 : f32
    %255 = vector.broadcast %cst_69 : f32 to vector<16x64xf32>
    %256 = arith.cmpf olt, %254, %255 : vector<16x64xf32>
    %cst_70 = arith.constant -1.000000e+00 : f32
    %cst_71 = arith.constant 1.000000e+00 : f32
    %257 = vector.broadcast %cst_70 : f32 to vector<16x64xf32>
    %258 = vector.broadcast %cst_71 : f32 to vector<16x64xf32>
    %259 = arith.select %256, %257, %258 : vector<16x64xi1>, vector<16x64xf32>
    %260 = math.absf %254 : vector<16x64xf32>
    %cst_72 = arith.constant 0.327591091 : f32
    %261 = vector.broadcast %cst_72 : f32 to vector<16x64xf32>
    %262 = arith.mulf %261, %260 : vector<16x64xf32>
    %cst_73 = arith.constant 1.000000e+00 : f32
    %263 = vector.broadcast %cst_73 : f32 to vector<16x64xf32>
    %264 = arith.addf %263, %262 : vector<16x64xf32>
    %cst_74 = arith.constant 1.000000e+00 : f32
    %265 = vector.broadcast %cst_74 : f32 to vector<16x64xf32>
    %266 = arith.divf %265, %264 : vector<16x64xf32>
    %cst_75 = arith.constant 1.06140542 : f32
    %267 = vector.broadcast %cst_75 : f32 to vector<16x64xf32>
    %268 = arith.mulf %267, %266 : vector<16x64xf32>
    %cst_76 = arith.constant -1.45315206 : f32
    %269 = vector.broadcast %cst_76 : f32 to vector<16x64xf32>
    %270 = arith.addf %268, %269 : vector<16x64xf32>
    %271 = arith.mulf %270, %266 : vector<16x64xf32>
    %cst_77 = arith.constant 1.42141378 : f32
    %272 = vector.broadcast %cst_77 : f32 to vector<16x64xf32>
    %273 = arith.addf %271, %272 : vector<16x64xf32>
    %274 = arith.mulf %273, %266 : vector<16x64xf32>
    %cst_78 = arith.constant -0.284496725 : f32
    %275 = vector.broadcast %cst_78 : f32 to vector<16x64xf32>
    %276 = arith.addf %274, %275 : vector<16x64xf32>
    %277 = arith.mulf %276, %266 : vector<16x64xf32>
    %cst_79 = arith.constant 0.254829586 : f32
    %278 = vector.broadcast %cst_79 : f32 to vector<16x64xf32>
    %279 = arith.addf %277, %278 : vector<16x64xf32>
    %280 = arith.mulf %279, %266 : vector<16x64xf32>
    %cst_80 = arith.constant 0.000000e+00 : f32
    %281 = vector.broadcast %cst_80 : f32 to vector<16x64xf32>
    %282 = arith.subf %281, %260 : vector<16x64xf32>
    %283 = arith.mulf %282, %260 : vector<16x64xf32>
    %284 = math.exp %283 : vector<16x64xf32>
    %285 = arith.mulf %280, %284 : vector<16x64xf32>
    %cst_81 = arith.constant 1.000000e+00 : f32
    %286 = vector.broadcast %cst_81 : f32 to vector<16x64xf32>
    %287 = arith.subf %286, %285 : vector<16x64xf32>
    %288 = arith.mulf %259, %287 : vector<16x64xf32>
    %cst_82 = arith.constant 1.000000e+00 : f32
    %289 = vector.broadcast %cst_82 : f32 to vector<16x64xf32>
    %290 = arith.addf %289, %288 : vector<16x64xf32>
    %291 = arith.mulf %252, %290 : vector<16x64xf32>
    %c1_83 = arith.constant 1 : index
    %c0_84 = arith.constant 0 : index
    %c0_85 = arith.constant 0 : index
    %292 = vector.load %arg6[%c1_83, %c0_84, %c0_85] : memref<2x64x32xf32, #tpu.memory_space<vmem>>, vector<1x64x32xf32>
    %293 = vector.shape_cast %292 : vector<1x64x32xf32> to vector<64x32xf32>
    %cst_86 = arith.constant dense<0.000000e+00> : vector<16x32xf32>
    %294 = tpu.matmul %291, %293, %cst_86 {dimension_numbers = #tpu.dot_dimension_numbers<[1], [0], [0], [1], [0, 0, 1, 1], [], []>} : vector<16x64xf32>, vector<64x32xf32>, vector<16x32xf32> -> vector<16x32xf32>
    %295 = vector.extract_strided_slice %0 {offsets = [13, 0], sizes = [1, 32], strides = [1, 1]} : vector<16x32xf32> to vector<1x32xf32>
    %296 = vector.broadcast %295 : vector<1x32xf32> to vector<16x32xf32>
    %297 = arith.addf %294, %296 : vector<16x32xf32>
    %298 = vector.extract_strided_slice %0 {offsets = [14, 0], sizes = [1, 32], strides = [1, 1]} : vector<16x32xf32> to vector<1x32xf32>
    %299 = vector.broadcast %298 : vector<1x32xf32> to vector<16x32xf32>
    %300 = arith.mulf %297, %299 : vector<16x32xf32>
    %301 = arith.addf %165, %300 : vector<16x32xf32>
    %302 = vector.extract_strided_slice %0 {offsets = [3, 0], sizes = [1, 32], strides = [1, 1]} : vector<16x32xf32> to vector<1x32xf32>
    %303 = vector.extract_strided_slice %0 {offsets = [4, 0], sizes = [1, 32], strides = [1, 1]} : vector<16x32xf32> to vector<1x32xf32>
    %cst_87 = arith.constant dense<0.000000e+00> : vector<16xf32>
    %304 = vector.multi_reduction <add>, %301, %cst_87 [1] : vector<16x32xf32> to vector<16xf32>
    %305 = vector.shape_cast %304 : vector<16xf32> to vector<16x1xf32>
    %cst_88 = arith.constant 3.200000e+01 : f32
    %306 = vector.broadcast %cst_88 : f32 to vector<16x1xf32>
    %307 = arith.divf %305, %306 : vector<16x1xf32>
    %308 = vector.broadcast %307 : vector<16x1xf32> to vector<16x32xf32>
    %309 = arith.subf %301, %308 : vector<16x32xf32>
    %310 = arith.mulf %309, %309 : vector<16x32xf32>
    %cst_89 = arith.constant dense<0.000000e+00> : vector<16xf32>
    %311 = vector.multi_reduction <add>, %310, %cst_89 [1] : vector<16x32xf32> to vector<16xf32>
    %312 = vector.shape_cast %311 : vector<16xf32> to vector<16x1xf32>
    %cst_90 = arith.constant 3.200000e+01 : f32
    %313 = vector.broadcast %cst_90 : f32 to vector<16x1xf32>
    %314 = arith.divf %312, %313 : vector<16x1xf32>
    %cst_91 = arith.constant 9.99999997E-7 : f32
    %315 = vector.broadcast %cst_91 : f32 to vector<16x1xf32>
    %316 = arith.addf %314, %315 : vector<16x1xf32>
    %317 = math.rsqrt %316 : vector<16x1xf32>
    %318 = vector.broadcast %317 : vector<16x1xf32> to vector<16x32xf32>
    %319 = arith.mulf %309, %318 : vector<16x32xf32>
    %320 = vector.broadcast %302 : vector<1x32xf32> to vector<16x32xf32>
    %321 = arith.mulf %319, %320 : vector<16x32xf32>
    %322 = vector.broadcast %303 : vector<1x32xf32> to vector<16x32xf32>
    %323 = arith.addf %321, %322 : vector<16x32xf32>
    %c0_92 = arith.constant 0 : index
    %c0_93 = arith.constant 0 : index
    %324 = vector.load %arg7[%c0_92, %c0_93] : memref<32x18xf32, #tpu.memory_space<vmem>>, vector<32x18xf32>
    %cst_94 = arith.constant dense<0.000000e+00> : vector<16x18xf32>
    %325 = tpu.matmul %323, %324, %cst_94 {dimension_numbers = #tpu.dot_dimension_numbers<[1], [0], [0], [1], [0, 0, 1, 1], [], []>} : vector<16x32xf32>, vector<32x18xf32>, vector<16x18xf32> -> vector<16x18xf32>
    %326 = vector.extract_strided_slice %0 {offsets = [15, 0], sizes = [1, 18], strides = [1, 1]} : vector<16x32xf32> to vector<1x18xf32>
    %327 = vector.broadcast %326 : vector<1x18xf32> to vector<16x18xf32>
    %328 = arith.addf %325, %327 : vector<16x18xf32>
    %329 = vector.extract_strided_slice %328 {offsets = [0, 0], sizes = [16, 9], strides = [1, 1]} : vector<16x18xf32> to vector<16x9xf32>
    %330 = vector.extract_strided_slice %328 {offsets = [0, 9], sizes = [16, 9], strides = [1, 1]} : vector<16x18xf32> to vector<16x9xf32>
    %331 = math.exp %329 : vector<16x9xf32>
    %cst_95 = arith.constant 1.000000e+02 : f32
    %332 = vector.broadcast %cst_95 : f32 to vector<16x9xf32>
    %333 = arith.minimumf %331, %332 : vector<16x9xf32>
    %334 = math.cos %330 : vector<16x9xf32>
    %335 = arith.mulf %333, %334 : vector<16x9xf32>
    %336 = math.sin %330 : vector<16x9xf32>
    %337 = arith.mulf %333, %336 : vector<16x9xf32>
    %338 = tpu.concatenate %335, %337 in 1 : vector<16x9xf32>, vector<16x9xf32> -> vector<16x18xf32>
    %339 = vector.extract_strided_slice %1 {offsets = [0, 7], sizes = [16, 1], strides = [1, 1]} : vector<16x15xf32> to vector<16x1xf32>
    %340 = vector.broadcast %339 : vector<16x1xf32> to vector<16x18xf32>
    %341 = arith.mulf %338, %340 : vector<16x18xf32>
    %342 = vector.extract_strided_slice %1 {offsets = [0, 8], sizes = [16, 1], strides = [1, 1]} : vector<16x15xf32> to vector<16x1xf32>
    %343 = vector.broadcast %342 : vector<16x1xf32> to vector<16x18xf32>
    %344 = arith.mulf %338, %343 : vector<16x18xf32>
    %345 = vector.extract_strided_slice %1 {offsets = [0, 9], sizes = [16, 1], strides = [1, 1]} : vector<16x15xf32> to vector<16x1xf32>
    %346 = vector.broadcast %345 : vector<16x1xf32> to vector<16x18xf32>
    %347 = arith.mulf %338, %346 : vector<16x18xf32>
    %348 = vector.extract_strided_slice %1 {offsets = [0, 10], sizes = [16, 1], strides = [1, 1]} : vector<16x15xf32> to vector<16x1xf32>
    %349 = vector.broadcast %348 : vector<16x1xf32> to vector<16x18xf32>
    %350 = arith.mulf %338, %349 : vector<16x18xf32>
    %351 = vector.extract_strided_slice %1 {offsets = [0, 11], sizes = [16, 1], strides = [1, 1]} : vector<16x15xf32> to vector<16x1xf32>
    %352 = vector.broadcast %351 : vector<16x1xf32> to vector<16x18xf32>
    %353 = arith.mulf %338, %352 : vector<16x18xf32>
    %354 = vector.extract_strided_slice %1 {offsets = [0, 12], sizes = [16, 1], strides = [1, 1]} : vector<16x15xf32> to vector<16x1xf32>
    %355 = vector.broadcast %354 : vector<16x1xf32> to vector<16x18xf32>
    %356 = arith.mulf %338, %355 : vector<16x18xf32>
    %357 = vector.extract_strided_slice %1 {offsets = [0, 13], sizes = [16, 1], strides = [1, 1]} : vector<16x15xf32> to vector<16x1xf32>
    %358 = vector.broadcast %357 : vector<16x1xf32> to vector<16x18xf32>
    %359 = arith.mulf %338, %358 : vector<16x18xf32>
    %360 = vector.extract_strided_slice %1 {offsets = [0, 14], sizes = [16, 1], strides = [1, 1]} : vector<16x15xf32> to vector<16x1xf32>
    %361 = vector.broadcast %360 : vector<16x1xf32> to vector<16x18xf32>
    %362 = arith.mulf %338, %361 : vector<16x18xf32>
    %363 = tpu.concatenate %341, %344, %347, %350, %353, %356, %359, %362 in 1 : vector<16x18xf32>, vector<16x18xf32>, vector<16x18xf32>, vector<16x18xf32>, vector<16x18xf32>, vector<16x18xf32>, vector<16x18xf32>, vector<16x18xf32> -> vector<16x144xf32>
    %364 = tpu.iota {dimensions = array<i32: 1>} : vector<2x16xi32>
    %365 = tpu.iota {dimensions = array<i32: 0>} : vector<2x16xi32>
    %c8_i32 = arith.constant 8 : i32
    %366 = vector.broadcast %c8_i32 : i32 to vector<2x16xi32>
    %367 = arith.muli %365, %366 : vector<2x16xi32>
    %368 = arith.cmpi sge, %364, %367 : vector<2x16xi32>
    %c1_i32_96 = arith.constant 1 : i32
    %369 = vector.broadcast %c1_i32_96 : i32 to vector<2x16xi32>
    %370 = arith.addi %365, %369 : vector<2x16xi32>
    %c8_i32_97 = arith.constant 8 : i32
    %371 = vector.broadcast %c8_i32_97 : i32 to vector<2x16xi32>
    %372 = arith.muli %370, %371 : vector<2x16xi32>
    %373 = arith.cmpi slt, %364, %372 : vector<2x16xi32>
    %374 = arith.andi %368, %373 : vector<2x16xi1>
    %375 = arith.extui %374 : vector<2x16xi1> to vector<2x16xi32>
    %376 = arith.sitofp %375 : vector<2x16xi32> to vector<2x16xf32>
    %cst_98 = arith.constant dense<0.000000e+00> : vector<2x144xf32>
    %377 = tpu.matmul %376, %363, %cst_98 {dimension_numbers = #tpu.dot_dimension_numbers<[1], [0], [0], [1], [0, 0, 1, 1], [], []>} : vector<2x16xf32>, vector<16x144xf32>, vector<2x144xf32> -> vector<2x144xf32>
    %c0_99 = arith.constant 0 : index
    %c0_100 = arith.constant 0 : index
    %378 = vector.load %arg9[%c0_99, %c0_100] : memref<144x32xf32, #tpu.memory_space<vmem>>, vector<144x32xf32>
    %cst_101 = arith.constant dense<0.000000e+00> : vector<2x32xf32>
    %379 = tpu.matmul %377, %378, %cst_101 {dimension_numbers = #tpu.dot_dimension_numbers<[1], [0], [0], [1], [0, 0, 1, 1], [], []>} : vector<2x144xf32>, vector<144x32xf32>, vector<2x32xf32> -> vector<2x32xf32>
    %c0_102 = arith.constant 0 : index
    %c0_103 = arith.constant 0 : index
    %380 = vector.load %arg10[%c0_102, %c0_103] : memref<2x32xf32, #tpu.memory_space<vmem>>, vector<2x32xf32>
    tpu.vector_store %arg10[%c0_102, %c0_103], %379 {strides = array<i32>} : memref<2x32xf32, #tpu.memory_space<vmem>>, vector<2x32xf32>,
    return
  }
}

</mosaic_0001>

<llo_original>
// kernel: vocos_forward.1
$region0: #{vocos_forward.1}
  #allocation0 [shape = 'u32[]', space=smem, size = 0x4, offset = 0x4, fixed_abs, tag = 'smem constant byte address 0x4 - core index']
  #allocation1 [shape = 'u32[144,128]{1,0:T(1,128)}', space=vmem, size = 0x12000, scoped, tag = 'internal scratch']
  %s0 = inlined_call_operand.vmem [shape: f32[16,28], index: 0, kind: input, shape index: {}]
  %s1 = inlined_call_operand.vmem [shape: f32[28,32], index: 1, kind: input, shape index: {}]
  %s2 = inlined_call_operand.vmem [shape: f32[16,32], index: 2, kind: input, shape index: {}]
  %s3 = inlined_call_operand.vmem [shape: f32[2,7,32], index: 3, kind: input, shape index: {}]
  %s4 = inlined_call_operand.vmem [shape: f32[2,32,64], index: 4, kind: input, shape index: {}]
  %s5 = inlined_call_operand.vmem [shape: f32[2,1,64], index: 5, kind: input, shape index: {}]
  %s6 = inlined_call_operand.vmem [shape: f32[2,64,32], index: 6, kind: input, shape index: {}]
  %s7 = inlined_call_operand.vmem [shape: f32[32,18], index: 7, kind: input, shape index: {}]
  %s8 = inlined_call_operand.vmem [shape: f32[16,15], index: 8, kind: input, shape index: {}]
  %s9 = inlined_call_operand.vmem [shape: f32[144,32], index: 9, kind: input, shape index: {}]
  %s10 = inlined_call_operand.hbm [shape: f32[2,32], index: 10, kind: output, shape index: {}]
  %s11 = sld [smem:[#allocation0]]
  $region50: #{vocos_forward.1} parent=0
    _
  %s13 = ssub.s32 1, %s11
  %s14 = scalar_select 0, %s13, %s11
  $region1: #{vocos_forward.1} parent=0
    #allocation2 [shape = 'u8[1024]{0}', space=vmem, size = 0x400, scoped, tag = 'output window, operand 0, single buffered']
    #allocation3 [shape = 's32[1]{0}', space=sflag, size = 0x4, scoped, tag = 'scoped memory for vocos_forward.1']
    %15 = vsyncpa [#allocation3], 0
    // Predicated region
    $region2: #{vocos_forward.1} parent=1 // pred_check
      _
    $region3: #{vocos_forward.1} parent=1 // pred_check_branch
      %17 = sbr.rel (0) target = $region5
    $region4: #{vocos_forward.1} parent=1 // pred_region
      _
    $region5: #{vocos_forward.1} parent=1 // pred_fallthru
      _
    // Predicated region
    $region6: #{vocos_forward.1} parent=1 // pred_check
      _
    $region7: #{vocos_forward.1} parent=1 // pred_check_branch
      %19 = sbr.rel (0) target = $region9
    $region8: #{vocos_forward.1} parent=1 // pred_region
      _
    $region9: #{vocos_forward.1} parent=1 // pred_fallthru
      _
    // Predicated region
    $region10: #{vocos_forward.1} parent=1 // pred_check
      _
    $region11: #{vocos_forward.1} parent=1 // pred_check_branch
      %21 = sbr.rel (0) target = $region13
    $region12: #{vocos_forward.1} parent=1 // pred_region
      _
    $region13: #{vocos_forward.1} parent=1 // pred_fallthru
      _
    // Predicated region
    $region14: #{vocos_forward.1} parent=1 // pred_check
      _
    $region15: #{vocos_forward.1} parent=1 // pred_check_branch
      %23 = sbr.rel (0) target = $region17
    $region16: #{vocos_forward.1} parent=1 // pred_region
      _
    $region17: #{vocos_forward.1} parent=1 // pred_fallthru
      _
    // Predicated region
    $region18: #{vocos_forward.1} parent=1 // pred_check
      _
    $region19: #{vocos_forward.1} parent=1 // pred_check_branch
      %25 = sbr.rel (0) target = $region21
    $region20: #{vocos_forward.1} parent=1 // pred_region
      _
    $region21: #{vocos_forward.1} parent=1 // pred_fallthru
      _
    // Predicated region
    $region22: #{vocos_forward.1} parent=1 // pred_check
      _
    $region23: #{vocos_forward.1} parent=1 // pred_check_branch
      %27 = sbr.rel (0) target = $region25
    $region24: #{vocos_forward.1} parent=1 // pred_region
      _
    $region25: #{vocos_forward.1} parent=1 // pred_fallthru
      _
    // Predicated region
    $region26: #{vocos_forward.1} parent=1 // pred_check
      _
    $region27: #{vocos_forward.1} parent=1 // pred_check_branch
      %29 = sbr.rel (0) target = $region29
    $region28: #{vocos_forward.1} parent=1 // pred_region
      _
    $region29: #{vocos_forward.1} parent=1 // pred_fallthru
      _
    // Predicated region
    $region30: #{vocos_forward.1} parent=1 // pred_check
      _
    $region31: #{vocos_forward.1} parent=1 // pred_check_branch
      %31 = sbr.rel (0) target = $region33
    $region32: #{vocos_forward.1} parent=1 // pred_region
      _
    $region33: #{vocos_forward.1} parent=1 // pred_fallthru
      _
    // Predicated region
    $region34: #{vocos_forward.1} parent=1 // pred_check
      _
    $region35: #{vocos_forward.1} parent=1 // pred_check_branch
      %33 = sbr.rel (0) target = $region37
    $region36: #{vocos_forward.1} parent=1 // pred_region
      _
    $region37: #{vocos_forward.1} parent=1 // pred_fallthru
      _
    // Predicated region
    $region38: #{vocos_forward.1} parent=1 // pred_check
      _
    $region39: #{vocos_forward.1} parent=1 // pred_check_branch
      %35 = sbr.rel (0) target = $region41
    $region40: #{vocos_forward.1} parent=1 // pred_region
      _
    $region41: #{vocos_forward.1} parent=1 // pred_fallthru
      _
    %v36 = vld [vmem:[%s2] sm:$0xff]
    %v37 = vld [vmem:[%s2 + $0x8] sm:$0xff]
    %v38 = vld [vmem:[%s8] sm:$0xff]
    %v39 = vld [vmem:[%s8 + $0x8] sm:$0xff]
    %v40 = vld [vmem:[%s0] sm:$0xff]
    %v41 = vld [vmem:[%s0 + $0x8] sm:$0xff]
    %v42 = vld [vmem:[%s1] sm:$0xff]
    %v43 = vld [vmem:[%s1 + $0x8] sm:$0xff]
    %v44 = vld [vmem:[%s1 + $0x10] sm:$0xff]
    %v45 = vld [vmem:[%s1 + $0x18] sm:$0xf]
    %v46 = vlaneseq
    %v47 = vshrl.u32 %v46, 7
    %v48 = vsub.s32 0, %v47
    %v49 = vrot.slane %v36, %v48
    %vm50 = vcmask 228352
    %v52 = vsel %vm50, %v40, 0
    %v55 = vsel %vm50, %v41, 0
    %vm57 = vcmask 1043456
    %v59 = vsel %vm57, %v45, 0
    %61 = vmatprep.subr.mxu0 0.0
    %62 = vmatpush1.msra.mxu0 %v42
    %63 = vmatprep.subr.mxu0 0.0
    %64 = vmatpush1.msra.mxu0 %v43
    %65 = vmatprep.subr.mxu0 0.0
    %66 = vmatpush1.msra.mxu0 %v44
    %67 = vmatprep.subr.mxu0 0.0
    %68 = vmatpush1.msra.mxu0 %v59
    %69 = vmatprep.subr.mxu0 0.0
    %70 = vmatpush1.msra.mxu0 0.0
    %71 = vmatprep.subr.mxu0 0.0
    %72 = vmatpush1.msra.mxu0 0.0
    %73 = vmatprep.subr.mxu0 0.0
    %74 = vmatpush1.msra.mxu0 0.0
    %75 = vmatprep.subr.mxu0 0.0
    %76 = vmatpush1.msra.mxu0 0.0
    %77 = vmatprep.subr.mxu0 0.0
    %78 = vmatpush1.msra.mxu0 0.0
    %79 = vmatprep.subr.mxu0 0.0
    %80 = vmatpush1.msra.mxu0 0.0
    %81 = vmatprep.subr.mxu0 0.0
    %82 = vmatpush1.msra.mxu0 0.0
    %83 = vmatprep.subr.mxu0 0.0
    %84 = vmatpush1.msra.mxu0 0.0
    %85 = vmatprep.subr.mxu0 0.0
    %86 = vmatpush1.msra.mxu0 0.0
    %87 = vmatprep.subr.mxu0 0.0
    %88 = vmatpush1.msra.mxu0 0.0
    %89 = vmatprep.subr.mxu0 0.0
    %90 = vmatpush1.msra.mxu0 0.0
    %91 = vmatprep.subr.mxu0 0.0
    %92 = vmatpush1.msra.mxu0 0.0
    %93 = vmatprep.subr.mxu0 0.0
    %94 = vmatpush1.msra.mxu0 0.0
    %95 = vmatprep.subr.mxu0 0.0
    %96 = vmatpush1.msra.mxu0 0.0
    %97 = vmatprep.subr.mxu0 0.0
    %98 = vmatpush1.msra.mxu0 0.0
    %99 = vmatprep.subr.mxu0 0.0
    %100 = vmatpush1.msra.mxu0 0.0
    %101 = vmatprep.subr.mxu0 0.0
    %102 = vmatpush1.msra.mxu0 0.0
    %103 = vmatprep.subr.mxu0 0.0
    %104 = vmatpush1.msra.mxu0 0.0
    %105 = vmatprep.subr.mxu0 0.0
    %106 = vmatpush1.msra.mxu0 0.0
    %107 = vmatprep.subr.mxu0 0.0
    %108 = vmatpush1.msra.mxu0 0.0
    %109 = vmatprep.subr.mxu0 0.0
    %110 = vmatpush1.msra.mxu0 0.0
    %111 = vmatprep.subr.mxu0 0.0
    %112 = vmatpush1.msra.mxu0 0.0
    %113 = vmatprep.subr.mxu0 0.0
    %114 = vmatpush1.msra.mxu0 0.0
    %115 = vmatprep.subr.mxu0 0.0
    %116 = vmatpush1.msra.mxu0 0.0
    %117 = vmatprep.subr.mxu0 0.0
    %118 = vmatpush1.msra.mxu0 0.0
    %119 = vmatprep.subr.mxu0 0.0
    %120 = vmatpush1.msra.mxu0 0.0
    %121 = vmatprep.subr.mxu0 0.0
    %122 = vmatpush1.msra.mxu0 0.0
    %123 = vmatprep.subr.mxu0 0.0
    %124 = vmatpush1.msra.mxu0 0.0
    %125 = vmatprep.mubr.f32.mxu0 0.0
    %126 = vmatmul.mubr.f32.gmra.mrb[0].mxu0 %v52
    %v127 = vpop.f32.mrb[0].mxu0
    %v128 = vadd.f32 %v49, %v127
    %v129 = vpop.f32.mrb[0].mxu0
    %130 = vmatprep.mubr.f32.mxu0 0.0
    %131 = vmatmul.mubr.f32.gmra.mrb[0].mxu0 %v55
    %v132 = vpop.f32.mrb[0].mxu0
    %v133 = vadd.f32 %v49, %v132
    %v134 = vpop.f32.mrb[0].mxu0
    %135 = vdwg.mxu0
    %vm136 = vcmask 261120
    %v137 = vsel %vm136, %v128, 0.0
    %138 = vadd.xlane.f32.xlu0 %v137
    %v139 = vpop.xlane.xlu0 %138
    %v140 = vsel %vm136, %v133, 0.0
    %141 = vadd.xlane.f32.xlu0 %v140
    %v142 = vpop.xlane.xlu0 %141
    %v143 = vrcp.pop 32.0
    %v144 = vmul.f32 %v139, %v143
    %v145 = vmul.f32 %v142, %v143
    %v146 = vsub.f32 %v128, %v144
    %v147 = vsub.f32 %v133, %v145
    %v148 = vmul.f32 %v146, %v146
    %v149 = vmul.f32 %v147, %v147
    %v150 = vsel %vm136, %v148, 0.0
    %151 = vadd.xlane.f32.xlu0 %v150
    %v152 = vpop.xlane.xlu0 %151
    %v153 = vsel %vm136, %v149, 0.0
    %154 = vadd.xlane.f32.xlu0 %v153
    %v155 = vpop.xlane.xlu0 %154
    %v156 = vmul.f32 %v152, %v143
    %v157 = vmul.f32 %v155, %v143
    %v158 = vadd.f32 %v156, 1e-06
    %v159 = vadd.f32 %v157, 1e-06
    %v160 = vrsqrt.pop %v158
    %v161 = vrsqrt.pop %v159
    %v162 = vmul.f32 %v146, %v160
    %v163 = vmul.f32 %v147, %v161
    %v164 = vlaneseq
    %v165 = vshrl.u32 %v164, 7
    %v166 = vsub.s32 1, %v165
    %v167 = vrot.slane %v36, %v166
    %v168 = vmul.f32 %v162, %v167
    %v169 = vmul.f32 %v163, %v167
    %v170 = vlaneseq
    %v171 = vshrl.u32 %v170, 7
    %v172 = vsub.s32 2, %v171
    %v173 = vrot.slane %v36, %v172
    %v174 = vadd.f32 %v168, %v173
    %v175 = vadd.f32 %v169, %v173
    %v176 = vld [vmem:[%s3] sm:$0x7f]
    %v177 = vlaneseq
    %v178 = vshrl.u32 %v177, 7
    %v179 = vsub.s32 3, %v178
    %v180 = vrot.slane %v176, %v179
    %v181 = vmul.f32 %v174, %v180
    %v182 = vmul.f32 %v175, %v180
    %v183 = vrot.slane %v174, 5
    %v184 = vrot.slane %v175, 5
    %v185 = vlaneseq
    %v186 = vshrl.u32 %v185, 7
    %vm187 = vcmp.lt.s32.totalorder %v186, 3
    %v188 = vsel %vm187, %v183, %v184
    %v189 = vsel %vm187, %v184, %v183
    %191 = vset.pattern.permute.xlu0 0
    %192 = vperm.xlu0 %191, %v38
    %v193 = vpop.permute.xlu0 %192
    %196 = vset.pattern.permute.xlu0 0
    %197 = vperm.xlu0 %196, %v39
    %v198 = vpop.permute.xlu0 %197
    %v200 = vmul.f32 %v189, %v193
    %v201 = vmul.f32 %v188, %v198
    %v202 = vlaneseq
    %v203 = vshrl.u32 %v202, 7
    %v204 = vsub.s32 0, %v203
    %v205 = vrot.slane %v176, %v204
    %v206 = vmul.f32 %v200, %v205
    %v207 = vmul.f32 %v201, %v205
    %v208 = vadd.f32 %v181, %v206
    %v209 = vadd.f32 %v182, %v207
    %v210 = vrot.slane %v174, 6
    %v211 = vrot.slane %v175, 6
    %vm212 = vcmp.lt.s32.totalorder %v186, 2
    %v213 = vsel %vm212, %v210, %v211
    %v214 = vsel %vm212, %v211, %v210
    %215 = vset.pattern.permute.xlu0 1
    %216 = vperm.xlu0 %215, %v38
    %v217 = vpop.permute.xlu0 %216
    %219 = vset.pattern.permute.xlu0 1
    %220 = vperm.xlu0 %219, %v39
    %v221 = vpop.permute.xlu0 %220
    %v223 = vmul.f32 %v214, %v217
    %v224 = vmul.f32 %v213, %v221
    %v225 = vlaneseq
    %v226 = vshrl.u32 %v225, 7
    %v227 = vsub.s32 1, %v226
    %v228 = vrot.slane %v176, %v227
    %v229 = vmul.f32 %v223, %v228
    %v230 = vmul.f32 %v224, %v228
    %v231 = vadd.f32 %v208, %v229
    %v232 = vadd.f32 %v209, %v230
    %v233 = vrot.slane %v174, 7
    %v234 = vrot.slane %v175, 7
    %vm235 = vcmp.lt.s32.totalorder %v186, 1
    %v236 = vsel %vm235, %v233, %v234
    %v237 = vsel %vm235, %v234, %v233
    %238 = vset.pattern.permute.xlu0 2
    %239 = vperm.xlu0 %238, %v38
    %v240 = vpop.permute.xlu0 %239
    %242 = vset.pattern.permute.xlu0 2
    %243 = vperm.xlu0 %242, %v39
    %v244 = vpop.permute.xlu0 %243
    %v246 = vmul.f32 %v237, %v240
    %v247 = vmul.f32 %v236, %v244
    %v248 = vlaneseq
    %v249 = vshrl.u32 %v248, 7
    %v250 = vsub.s32 2, %v249
    %v251 = vrot.slane %v176, %v250
    %v252 = vmul.f32 %v246, %v251
    %v253 = vmul.f32 %v247, %v251
    %v254 = vadd.f32 %v231, %v252
    %v255 = vadd.f32 %v232, %v253
    %v256 = vrot.slane %v174, 1
    %v257 = vrot.slane %v175, 1
    %vm258 = vcmp.lt.s32.totalorder %v186, 7
    %v259 = vsel %vm258, %v256, %v257
    %v260 = vsel %vm258, %v257, %v256
    %261 = vset.pattern.permute.xlu0 4
    %262 = vperm.xlu0 %261, %v38
    %v263 = vpop.permute.xlu0 %262
    %265 = vset.pattern.permute.xlu0 4
    %266 = vperm.xlu0 %265, %v39
    %v267 = vpop.permute.xlu0 %266
    %v269 = vmul.f32 %v259, %v263
    %v270 = vmul.f32 %v260, %v267
    %v271 = vlaneseq
    %v272 = vshrl.u32 %v271, 7
    %v273 = vsub.s32 4, %v272
    %v274 = vrot.slane %v176, %v273
    %v275 = vmul.f32 %v269, %v274
    %v276 = vmul.f32 %v270, %v274
    %v277 = vadd.f32 %v254, %v275
    %v278 = vadd.f32 %v255, %v276
    %v279 = vrot.slane %v174, 2
    %v280 = vrot.slane %v175, 2
    %vm281 = vcmp.lt.s32.totalorder %v186, 6
    %v282 = vsel %vm281, %v279, %v280
    %v283 = vsel %vm281, %v280, %v279
    %284 = vset.pattern.permute.xlu0 5
    %285 = vperm.xlu0 %284, %v38
    %v286 = vpop.permute.xlu0 %285
    %288 = vset.pattern.permute.xlu0 5
    %289 = vperm.xlu0 %288, %v39
    %v290 = vpop.permute.xlu0 %289
    %v292 = vmul.f32 %v282, %v286
    %v293 = vmul.f32 %v283, %v290
    %v294 = vlaneseq
    %v295 = vshrl.u32 %v294, 7
    %v296 = vsub.s32 5, %v295
    %v297 = vrot.slane %v176, %v296
    %v298 = vmul.f32 %v292, %v297
    %v299 = vmul.f32 %v293, %v297
    %v300 = vadd.f32 %v277, %v298
    %v301 = vadd.f32 %v278, %v299
    %v302 = vrot.slane %v174, 3
    %v303 = vrot.slane %v175, 3
    %vm304 = vcmp.lt.s32.totalorder %v186, 5
    %v305 = vsel %vm304, %v302, %v303
    %v306 = vsel %vm304, %v303, %v302
    %307 = vset.pattern.permute.xlu0 6
    %308 = vperm.xlu0 %307, %v38
    %v309 = vpop.permute.xlu0 %308
    %311 = vset.pattern.permute.xlu0 6
    %312 = vperm.xlu0 %311, %v39
    %v313 = vpop.permute.xlu0 %312
    %v315 = vmul.f32 %v305, %v309
    %v316 = vmul.f32 %v306, %v313
    %v317 = vlaneseq
    %v318 = vshrl.u32 %v317, 7
    %v319 = vsub.s32 6, %v318
    %v320 = vrot.slane %v176, %v319
    %v321 = vmul.f32 %v315, %v320
    %v322 = vmul.f32 %v316, %v320
    %v323 = vadd.f32 %v300, %v321
    %v324 = vadd.f32 %v301, %v322
    %v325 = vlaneseq
    %v326 = vshrl.u32 %v325, 7
    %v327 = vsub.s32 5, %v326
    %v328 = vrot.slane %v36, %v327
    %v329 = vadd.f32 %v323, %v328
    %v330 = vadd.f32 %v324, %v328
    %v331 = vsel %vm136, %v329, 0.0
    %332 = vadd.xlane.f32.xlu0 %v331
    %v333 = vpop.xlane.xlu0 %332
    %v334 = vsel %vm136, %v330, 0.0
    %335 = vadd.xlane.f32.xlu0 %v334
    %v336 = vpop.xlane.xlu0 %335
    %v337 = vmul.f32 %v333, %v143
    %v338 = vmul.f32 %v336, %v143
    %v339 = vsub.f32 %v329, %v337
    %v340 = vsub.f32 %v330, %v338
    %v341 = vmul.f32 %v339, %v339
    %v342 = vmul.f32 %v340, %v340
    %v343 = vsel %vm136, %v341, 0.0
    %344 = vadd.xlane.f32.xlu0 %v343
    %v345 = vpop.xlane.xlu0 %344
    %v346 = vsel %vm136, %v342, 0.0
    %347 = vadd.xlane.f32.xlu0 %v346
    %v348 = vpop.xlane.xlu0 %347
    %v349 = vmul.f32 %v345, %v143
    %v350 = vmul.f32 %v348, %v143
    %v351 = vadd.f32 %v349, 1e-06
    %v352 = vadd.f32 %v350, 1e-06
    %v353 = vrsqrt.pop %v351
    %v354 = vrsqrt.pop %v352
    %v355 = vmul.f32 %v339, %v353
    %v356 = vmul.f32 %v340, %v354
    %v357 = vlaneseq
    %v358 = vshrl.u32 %v357, 7
    %v359 = vsub.s32 6, %v358
    %v360 = vrot.slane %v36, %v359
    %v361 = vmul.f32 %v355, %v360
    %v362 = vmul.f32 %v356, %v360
    %v363 = vlaneseq
    %v364 = vshrl.u32 %v363, 7
    %v365 = vsub.s32 7, %v364
    %v366 = vrot.slane %v36, %v365
    %v367 = vadd.f32 %v361, %v366
    %v368 = vadd.f32 %v362, %v366
    %v369 = vld [vmem:[%s4] sm:$0xff]
    %v370 = vld [vmem:[%s4 + $0x8] sm:$0xff]
    %v371 = vld [vmem:[%s4 + $0x10] sm:$0xff]
    %v372 = vld [vmem:[%s4 + $0x18] sm:$0xff]
    %v373 = vld [vmem:[%s5] sm:$0x1]
    %v375 = vlaneseq
    %v376 = vshrl.u32 %v375, 7
    %v377 = vsub.s32 0, %v376
    %v378 = vrot.slane %v373, %v377
    %v381 = vsel %vm136, %v367, 0
    %v384 = vsel %vm136, %v368, 0
    %386 = vmatprep.subr.mxu0 0.0
    %387 = vmatpush1.msra.mxu0 %v369
    %388 = vmatprep.subr.mxu0 0.0
    %389 = vmatpush1.msra.mxu0 %v370
    %390 = vmatprep.subr.mxu0 0.0
    %391 = vmatpush1.msra.mxu0 %v371
    %392 = vmatprep.subr.mxu0 0.0
    %393 = vmatpush1.msra.mxu0 %v372
    %394 = vmatprep.subr.mxu0 0.0
    %395 = vmatpush1.msra.mxu0 0.0
    %396 = vmatprep.subr.mxu0 0.0
    %397 = vmatpush1.msra.mxu0 0.0
    %398 = vmatprep.subr.mxu0 0.0
    %399 = vmatpush1.msra.mxu0 0.0
    %400 = vmatprep.subr.mxu0 0.0
    %401 = vmatpush1.msra.mxu0 0.0
    %402 = vmatprep.subr.mxu0 0.0
    %403 = vmatpush1.msra.mxu0 0.0
    %404 = vmatprep.subr.mxu0 0.0
    %405 = vmatpush1.msra.mxu0 0.0
    %406 = vmatprep.subr.mxu0 0.0
    %407 = vmatpush1.msra.mxu0 0.0
    %408 = vmatprep.subr.mxu0 0.0
    %409 = vmatpush1.msra.mxu0 0.0
    %410 = vmatprep.subr.mxu0 0.0
    %411 = vmatpush1.msra.mxu0 0.0
    %412 = vmatprep.subr.mxu0 0.0
    %413 = vmatpush1.msra.mxu0 0.0
    %414 = vmatprep.subr.mxu0 0.0
    %415 = vmatpush1.msra.mxu0 0.0
    %416 = vmatprep.subr.mxu0 0.0
    %417 = vmatpush1.msra.mxu0 0.0
    %418 = vmatprep.subr.mxu0 0.0
    %419 = vmatpush1.msra.mxu0 0.0
    %420 = vmatprep.subr.mxu0 0.0
    %421 = vmatpush1.msra.mxu0 0.0
    %422 = vmatprep.subr.mxu0 0.0
    %423 = vmatpush1.msra.mxu0 0.0
    %424 = vmatprep.subr.mxu0 0.0
    %425 = vmatpush1.msra.mxu0 0.0
    %426 = vmatprep.subr.mxu0 0.0
    %427 = vmatpush1.msra.mxu0 0.0
    %428 = vmatprep.subr.mxu0 0.0
    %429 = vmatpush1.msra.mxu0 0.0
    %430 = vmatprep.subr.mxu0 0.0
    %431 = vmatpush1.msra.mxu0 0.0
    %432 = vmatprep.subr.mxu0 0.0
    %433 = vmatpush1.msra.mxu0 0.0
    %434 = vmatprep.subr.mxu0 0.0
    %435 = vmatpush1.msra.mxu0 0.0
    %436 = vmatprep.subr.mxu0 0.0
    %437 = vmatpush1.msra.mxu0 0.0
    %438 = vmatprep.subr.mxu0 0.0
    %439 = vmatpush1.msra.mxu0 0.0
    %440 = vmatprep.subr.mxu0 0.0
    %441 = vmatpush1.msra.mxu0 0.0
    %442 = vmatprep.subr.mxu0 0.0
    %443 = vmatpush1.msra.mxu0 0.0
    %444 = vmatprep.subr.mxu0 0.0
    %445 = vmatpush1.msra.mxu0 0.0
    %446 = vmatprep.subr.mxu0 0.0
    %447 = vmatpush1.msra.mxu0 0.0
    %448 = vmatprep.subr.mxu0 0.0
    %449 = vmatpush1.msra.mxu0 0.0
    %450 = vmatprep.mubr.f32.mxu0 0.0
    %451 = vmatmul.mubr.f32.gmra.mrb[0].mxu0 %v381
    %v452 = vpop.f32.mrb[0].mxu0
    %v453 = vadd.f32 %v378, %v452
    %v454 = vpop.f32.mrb[0].mxu0
    %455 = vmatprep.mubr.f32.mxu0 0.0
    %456 = vmatmul.mubr.f32.gmra.mrb[0].mxu0 %v384
    %v457 = vpop.f32.mrb[0].mxu0
    %v458 = vadd.f32 %v378, %v457
    %v459 = vpop.f32.mrb[0].mxu0
    %460 = vdwg.mxu0
    %v461 = vmul.f32 %v453, 0.5
    %v462 = vmul.f32 %v458, 0.5
    %v463 = vmul.f32 %v453, 0.70710677
    %v464 = vmul.f32 %v458, 0.70710677
    %vm465 = vcmp.lt.f32.partialorder %v463, 0.0
    %vm466 = vcmp.lt.f32.partialorder %v464, 0.0
    %v467 = vsel %vm465, -1.0, 1.0
    %v468 = vsel %vm466, -1.0, 1.0
    %v469 = vand.u32 2147483647, %v463
    %v470 = vand.u32 2147483647, %v464
    %v471 = vmul.f32 %v469, 0.3275911
    %v472 = vmul.f32 %v470, 0.3275911
    %v473 = vadd.f32 %v471, 1.0
    %v474 = vadd.f32 %v472, 1.0
    %v475 = vrcp.pop %v473
    %v476 = vmul.f32 1.0, %v475
    %v477 = vrcp.pop %v474
    %v478 = vmul.f32 1.0, %v477
    %v479 = vmul.f32 %v476, 1.0614054
    %v480 = vmul.f32 %v478, 1.0614054
    %v481 = vadd.f32 %v479, -1.4531521
    %v482 = vadd.f32 %v480, -1.4531521
    %v483 = vmul.f32 %v481, %v476
    %v484 = vmul.f32 %v482, %v478
    %v485 = vadd.f32 %v483, 1.4214138
    %v486 = vadd.f32 %v484, 1.4214138
    %v487 = vmul.f32 %v485, %v476
    %v488 = vmul.f32 %v486, %v478
    %v489 = vadd.f32 %v487, -0.28449672
    %v490 = vadd.f32 %v488, -0.28449672
    %v491 = vmul.f32 %v489, %v476
    %v492 = vmul.f32 %v490, %v478
    %v493 = vadd.f32 %v491, 0.2548296
    %v494 = vadd.f32 %v492, 0.2548296
    %v495 = vmul.f32 %v493, %v476
    %v496 = vmul.f32 %v494, %v478
    %v497 = vsub.f32 0.0, %v469
    %v498 = vsub.f32 0.0, %v470
    %v499 = vmul.f32 %v497, %v469
    %v500 = vmul.f32 %v498, %v470
    %v501 = vmul.f32 %v499, 1.442695
    %v502 = vpow.pop %v501
    %v503 = vmul.f32 %v500, 1.442695
    %v504 = vpow.pop %v503
    %v505 = vmul.f32 %v495, %v502
    %v506 = vmul.f32 %v496, %v504
    %v507 = vsub.f32 1.0, %v505
    %v508 = vsub.f32 1.0, %v506
    %v509 = vmul.f32 %v467, %v507
    %v510 = vmul.f32 %v468, %v508
    %v511 = vadd.f32 %v509, 1.0
    %v512 = vadd.f32 %v510, 1.0
    %v513 = vmul.f32 %v461, %v511
    %v514 = vmul.f32 %v462, %v512
    %v515 = vld [vmem:[%s6] sm:$0xff]
    %v516 = vld [vmem:[%s6 + $0x8] sm:$0xff]
    %v517 = vld [vmem:[%s6 + $0x10] sm:$0xff]
    %v518 = vld [vmem:[%s6 + $0x18] sm:$0xff]
    %v519 = vld [vmem:[%s6 + $0x20] sm:$0xff]
    %v520 = vld [vmem:[%s6 + $0x28] sm:$0xff]
    %v521 = vld [vmem:[%s6 + $0x30] sm:$0xff]
    %v522 = vld [vmem:[%s6 + $0x38] sm:$0xff]
    %v523 = vlaneseq
    %v524 = vshrl.u32 %v523, 7
    %v525 = vsub.s32 0, %v524
    %v526 = vrot.slane %v37, %v525
    %vm527 = vcmask 523264
    %v529 = vsel %vm527, %v513, 0
    %v532 = vsel %vm527, %v514, 0
    %534 = vmatprep.subr.mxu0 0.0
    %535 = vmatpush1.msra.mxu0 %v515
    %536 = vmatprep.subr.mxu0 0.0
    %537 = vmatpush1.msra.mxu0 %v516
    %538 = vmatprep.subr.mxu0 0.0
    %539 = vmatpush1.msra.mxu0 %v517
    %540 = vmatprep.subr.mxu0 0.0
    %541 = vmatpush1.msra.mxu0 %v518
    %542 = vmatprep.subr.mxu0 0.0
    %543 = vmatpush1.msra.mxu0 %v519
    %544 = vmatprep.subr.mxu0 0.0
    %545 = vmatpush1.msra.mxu0 %v520
    %546 = vmatprep.subr.mxu0 0.0
    %547 = vmatpush1.msra.mxu0 %v521
    %548 = vmatprep.subr.mxu0 0.0
    %549 = vmatpush1.msra.mxu0 %v522
    %550 = vmatprep.subr.mxu0 0.0
    %551 = vmatpush1.msra.mxu0 0.0
    %552 = vmatprep.subr.mxu0 0.0
    %553 = vmatpush1.msra.mxu0 0.0
    %554 = vmatprep.subr.mxu0 0.0
    %555 = vmatpush1.msra.mxu0 0.0
    %556 = vmatprep.subr.mxu0 0.0
    %557 = vmatpush1.msra.mxu0 0.0
    %558 = vmatprep.subr.mxu0 0.0
    %559 = vmatpush1.msra.mxu0 0.0
    %560 = vmatprep.subr.mxu0 0.0
    %561 = vmatpush1.msra.mxu0 0.0
    %562 = vmatprep.subr.mxu0 0.0
    %563 = vmatpush1.msra.mxu0 0.0
    %564 = vmatprep.subr.mxu0 0.0
    %565 = vmatpush1.msra.mxu0 0.0
    %566 = vmatprep.subr.mxu0 0.0
    %567 = vmatpush1.msra.mxu0 0.0
    %568 = vmatprep.subr.mxu0 0.0
    %569 = vmatpush1.msra.mxu0 0.0
    %570 = vmatprep.subr.mxu0 0.0
    %571 = vmatpush1.msra.mxu0 0.0
    %572 = vmatprep.subr.mxu0 0.0
    %573 = vmatpush1.msra.mxu0 0.0
    %574 = vmatprep.subr.mxu0 0.0
    %575 = vmatpush1.msra.mxu0 0.0
    %576 = vmatprep.subr.mxu0 0.0
    %577 = vmatpush1.msra.mxu0 0.0
    %578 = vmatprep.subr.mxu0 0.0
    %579 = vmatpush1.msra.mxu0 0.0
    %580 = vmatprep.subr.mxu0 0.0
    %581 = vmatpush1.msra.mxu0 0.0
    %582 = vmatprep.subr.mxu0 0.0
    %583 = vmatpush1.msra.mxu0 0.0
    %584 = vmatprep.subr.mxu0 0.0
    %585 = vmatpush1.msra.mxu0 0.0
    %586 = vmatprep.subr.mxu0 0.0
    %587 = vmatpush1.msra.mxu0 0.0
    %588 = vmatprep.subr.mxu0 0.0
    %589 = vmatpush1.msra.mxu0 0.0
    %590 = vmatprep.subr.mxu0 0.0
    %591 = vmatpush1.msra.mxu0 0.0
    %592 = vmatprep.subr.mxu0 0.0
    %593 = vmatpush1.msra.mxu0 0.0
    %594 = vmatprep.subr.mxu0 0.0
    %595 = vmatpush1.msra.mxu0 0.0
    %596 = vmatprep.subr.mxu0 0.0
    %597 = vmatpush1.msra.mxu0 0.0
    %598 = vmatprep.mubr.f32.mxu0 0.0
    %599 = vmatmul.mubr.f32.gmra.mrb[0].mxu0 %v529
    %v600 = vpop.f32.mrb[0].mxu0
    %v601 = vadd.f32 %v526, %v600
    %v602 = vpop.f32.mrb[0].mxu0
    %603 = vmatprep.mubr.f32.mxu0 0.0
    %604 = vmatmul.mubr.f32.gmra.mrb[0].mxu0 %v532
    %v605 = vpop.f32.mrb[0].mxu0
    %v606 = vadd.f32 %v526, %v605
    %v607 = vpop.f32.mrb[0].mxu0
    %608 = vdwg.mxu0
    %v609 = vlaneseq
    %v610 = vshrl.u32 %v609, 7
    %v611 = vsub.s32 1, %v610
    %v612 = vrot.slane %v37, %v611
    %v613 = vmul.f32 %v601, %v612
    %v614 = vmul.f32 %v606, %v612
    %v615 = vadd.f32 %v174, %v613
    %v616 = vadd.f32 %v175, %v614
    %s617 = scalar_lea.vmem %s3, 8
    %v618 = vld [vmem:[%s617] sm:$0x7f]
    %v619 = vlaneseq
    %v620 = vshrl.u32 %v619, 7
    %v621 = vsub.s32 3, %v620
    %v622 = vrot.slane %v618, %v621
    %v623 = vmul.f32 %v615, %v622
    %v624 = vmul.f32 %v616, %v622
    %v625 = vrot.slane %v615, 5
    %v626 = vrot.slane %v616, 5
    %v627 = vsel %vm187, %v625, %v626
    %v628 = vsel %vm187, %v626, %v625
    %v629 = vmul.f32 %v628, %v193
    %v630 = vmul.f32 %v627, %v198
    %v631 = vlaneseq
    %v632 = vshrl.u32 %v631, 7
    %v633 = vsub.s32 0, %v632
    %v634 = vrot.slane %v618, %v633
    %v635 = vmul.f32 %v629, %v634
    %v636 = vmul.f32 %v630, %v634
    %v637 = vadd.f32 %v623, %v635
    %v638 = vadd.f32 %v624, %v636
    %v639 = vrot.slane %v615, 6
    %v640 = vrot.slane %v616, 6
    %v641 = vsel %vm212, %v639, %v640
    %v642 = vsel %vm212, %v640, %v639
    %v643 = vmul.f32 %v642, %v217
    %v644 = vmul.f32 %v641, %v221
    %v645 = vlaneseq
    %v646 = vshrl.u32 %v645, 7
    %v647 = vsub.s32 1, %v646
    %v648 = vrot.slane %v618, %v647
    %v649 = vmul.f32 %v643, %v648
    %v650 = vmul.f32 %v644, %v648
    %v651 = vadd.f32 %v637, %v649
    %v652 = vadd.f32 %v638, %v650
    %v653 = vrot.slane %v615, 7
    %v654 = vrot.slane %v616, 7
    %v655 = vsel %vm235, %v653, %v654
    %v656 = vsel %vm235, %v654, %v653
    %v657 = vmul.f32 %v656, %v240
    %v658 = vmul.f32 %v655, %v244
    %v659 = vlaneseq
    %v660 = vshrl.u32 %v659, 7
    %v661 = vsub.s32 2, %v660
    %v662 = vrot.slane %v618, %v661
    %v663 = vmul.f32 %v657, %v662
    %v664 = vmul.f32 %v658, %v662
    %v665 = vadd.f32 %v651, %v663
    %v666 = vadd.f32 %v652, %v664
    %v667 = vrot.slane %v615, 1
    %v668 = vrot.slane %v616, 1
    %v669 = vsel %vm258, %v667, %v668
    %v670 = vsel %vm258, %v668, %v667
    %v671 = vmul.f32 %v669, %v263
    %v672 = vmul.f32 %v670, %v267
    %v673 = vlaneseq
    %v674 = vshrl.u32 %v673, 7
    %v675 = vsub.s32 4, %v674
    %v676 = vrot.slane %v618, %v675
    %v677 = vmul.f32 %v671, %v676
    %v678 = vmul.f32 %v672, %v676
    %v679 = vadd.f32 %v665, %v677
    %v680 = vadd.f32 %v666, %v678
    %v681 = vrot.slane %v615, 2
    %v682 = vrot.slane %v616, 2
    %v683 = vsel %vm281, %v681, %v682
    %v684 = vsel %vm281, %v682, %v681
    %v685 = vmul.f32 %v683, %v286
    %v686 = vmul.f32 %v684, %v290
    %v687 = vlaneseq
    %v688 = vshrl.u32 %v687, 7
    %v689 = vsub.s32 5, %v688
    %v690 = vrot.slane %v618, %v689
    %v691 = vmul.f32 %v685, %v690
    %v692 = vmul.f32 %v686, %v690
    %v693 = vadd.f32 %v679, %v691
    %v694 = vadd.f32 %v680, %v692
    %v695 = vrot.slane %v615, 3
    %v696 = vrot.slane %v616, 3
    %v697 = vsel %vm304, %v695, %v696
    %v698 = vsel %vm304, %v696, %v695
    %v699 = vmul.f32 %v697, %v309
    %v700 = vmul.f32 %v698, %v313
    %v701 = vlaneseq
    %v702 = vshrl.u32 %v701, 7
    %v703 = vsub.s32 6, %v702
    %v704 = vrot.slane %v618, %v703
    %v705 = vmul.f32 %v699, %v704
    %v706 = vmul.f32 %v700, %v704
    %v707 = vadd.f32 %v693, %v705
    %v708 = vadd.f32 %v694, %v706
    %v709 = vlaneseq
    %v710 = vshrl.u32 %v709, 7
    %v711 = vsub.s32 2, %v710
    %v712 = vrot.slane %v37, %v711
    %v713 = vadd.f32 %v707, %v712
    %v714 = vadd.f32 %v708, %v712
    %v715 = vsel %vm136, %v713, 0.0
    %716 = vadd.xlane.f32.xlu0 %v715
    %v717 = vpop.xlane.xlu0 %716
    %v718 = vsel %vm136, %v714, 0.0
    %719 = vadd.xlane.f32.xlu0 %v718
    %v720 = vpop.xlane.xlu0 %719
    %v721 = vmul.f32 %v717, %v143
    %v722 = vmul.f32 %v720, %v143
    %v723 = vsub.f32 %v713, %v721
    %v724 = vsub.f32 %v714, %v722
    %v725 = vmul.f32 %v723, %v723
    %v726 = vmul.f32 %v724, %v724
    %v727 = vsel %vm136, %v725, 0.0
    %728 = vadd.xlane.f32.xlu0 %v727
    %v729 = vpop.xlane.xlu0 %728
    %v730 = vsel %vm136, %v726, 0.0
    %731 = vadd.xlane.f32.xlu0 %v730
    %v732 = vpop.xlane.xlu0 %731
    %v733 = vmul.f32 %v729, %v143
    %v734 = vmul.f32 %v732, %v143
    %v735 = vadd.f32 %v733, 1e-06
    %v736 = vadd.f32 %v734, 1e-06
    %v737 = vrsqrt.pop %v735
    %v738 = vrsqrt.pop %v736
    %v739 = vmul.f32 %v723, %v737
    %v740 = vmul.f32 %v724, %v738
    %v741 = vlaneseq
    %v742 = vshrl.u32 %v741, 7
    %v743 = vsub.s32 3, %v742
    %v744 = vrot.slane %v37, %v743
    %v745 = vmul.f32 %v739, %v744
    %v746 = vmul.f32 %v740, %v744
    %v747 = vlaneseq
    %v748 = vshrl.u32 %v747, 7
    %v749 = vsub.s32 4, %v748
    %v750 = vrot.slane %v37, %v749
    %v751 = vadd.f32 %v745, %v750
    %v752 = vadd.f32 %v746, %v750
    %s753 = scalar_lea.vmem %s4, 32
    %v754 = vld [vmem:[%s753] sm:$0xff]
    %v755 = vld [vmem:[%s753 + $0x8] sm:$0xff]
    %v756 = vld [vmem:[%s753 + $0x10] sm:$0xff]
    %v757 = vld [vmem:[%s753 + $0x18] sm:$0xff]
    %s758 = scalar_lea.vmem %s5, 1
    %v759 = vld [vmem:[%s758] sm:$0x1]
    %v761 = vlaneseq
    %v762 = vshrl.u32 %v761, 7
    %v763 = vsub.s32 0, %v762
    %v764 = vrot.slane %v759, %v763
    %v767 = vsel %vm136, %v751, 0
    %v770 = vsel %vm136, %v752, 0
    %772 = vmatprep.subr.mxu0 0.0
    %773 = vmatpush1.msra.mxu0 %v754
    %774 = vmatprep.subr.mxu0 0.0
    %775 = vmatpush1.msra.mxu0 %v755
    %776 = vmatprep.subr.mxu0 0.0
    %777 = vmatpush1.msra.mxu0 %v756
    %778 = vmatprep.subr.mxu0 0.0
    %779 = vmatpush1.msra.mxu0 %v757
    %780 = vmatprep.subr.mxu0 0.0
    %781 = vmatpush1.msra.mxu0 0.0
    %782 = vmatprep.subr.mxu0 0.0
    %783 = vmatpush1.msra.mxu0 0.0
    %784 = vmatprep.subr.mxu0 0.0
    %785 = vmatpush1.msra.mxu0 0.0
    %786 = vmatprep.subr.mxu0 0.0
    %787 = vmatpush1.msra.mxu0 0.0
    %788 = vmatprep.subr.mxu0 0.0
    %789 = vmatpush1.msra.mxu0 0.0
    %790 = vmatprep.subr.mxu0 0.0
    %791 = vmatpush1.msra.mxu0 0.0
    %792 = vmatprep.subr.mxu0 0.0
    %793 = vmatpush1.msra.mxu0 0.0
    %794 = vmatprep.subr.mxu0 0.0
    %795 = vmatpush1.msra.mxu0 0.0
    %796 = vmatprep.subr.mxu0 0.0
    %797 = vmatpush1.msra.mxu0 0.0
    %798 = vmatprep.subr.mxu0 0.0
    %799 = vmatpush1.msra.mxu0 0.0
    %800 = vmatprep.subr.mxu0 0.0
    %801 = vmatpush1.msra.mxu0 0.0
    %802 = vmatprep.subr.mxu0 0.0
    %803 = vmatpush1.msra.mxu0 0.0
    %804 = vmatprep.subr.mxu0 0.0
    %805 = vmatpush1.msra.mxu0 0.0
    %806 = vmatprep.subr.mxu0 0.0
    %807 = vmatpush1.msra.mxu0 0.0
    %808 = vmatprep.subr.mxu0 0.0
    %809 = vmatpush1.msra.mxu0 0.0
    %810 = vmatprep.subr.mxu0 0.0
    %811 = vmatpush1.msra.mxu0 0.0
    %812 = vmatprep.subr.mxu0 0.0
    %813 = vmatpush1.msra.mxu0 0.0
    %814 = vmatprep.subr.mxu0 0.0
    %815 = vmatpush1.msra.mxu0 0.0
    %816 = vmatprep.subr.mxu0 0.0
    %817 = vmatpush1.msra.mxu0 0.0
    %818 = vmatprep.subr.mxu0 0.0
    %819 = vmatpush1.msra.mxu0 0.0
    %820 = vmatprep.subr.mxu0 0.0
    %821 = vmatpush1.msra.mxu0 0.0
    %822 = vmatprep.subr.mxu0 0.0
    %823 = vmatpush1.msra.mxu0 0.0
    %824 = vmatprep.subr.mxu0 0.0
    %825 = vmatpush1.msra.mxu0 0.0
    %826 = vmatprep.subr.mxu0 0.0
    %827 = vmatpush1.msra.mxu0 0.0
    %828 = vmatprep.subr.mxu0 0.0
    %829 = vmatpush1.msra.mxu0 0.0
    %830 = vmatprep.subr.mxu0 0.0
    %831 = vmatpush1.msra.mxu0 0.0
    %832 = vmatprep.subr.mxu0 0.0
    %833 = vmatpush1.msra.mxu0 0.0
    %834 = vmatprep.subr.mxu0 0.0
    %835 = vmatpush1.msra.mxu0 0.0
    %836 = vmatprep.mubr.f32.mxu0 0.0
    %837 = vmatmul.mubr.f32.gmra.mrb[0].mxu0 %v767
    %v838 = vpop.f32.mrb[0].mxu0
    %v839 = vadd.f32 %v764, %v838
    %v840 = vpop.f32.mrb[0].mxu0
    %841 = vmatprep.mubr.f32.mxu0 0.0
    %842 = vmatmul.mubr.f32.gmra.mrb[0].mxu0 %v770
    %v843 = vpop.f32.mrb[0].mxu0
    %v844 = vadd.f32 %v764, %v843
    %v845 = vpop.f32.mrb[0].mxu0
    %846 = vdwg.mxu0
    %v847 = vmul.f32 %v839, 0.5
    %v848 = vmul.f32 %v844, 0.5
    %v849 = vmul.f32 %v839, 0.70710677
    %v850 = vmul.f32 %v844, 0.70710677
    %vm851 = vcmp.lt.f32.partialorder %v849, 0.0
    %vm852 = vcmp.lt.f32.partialorder %v850, 0.0
    %v853 = vsel %vm851, -1.0, 1.0
    %v854 = vsel %vm852, -1.0, 1.0
    %v855 = vand.u32 2147483647, %v849
    %v856 = vand.u32 2147483647, %v850
    %v857 = vmul.f32 %v855, 0.3275911
    %v858 = vmul.f32 %v856, 0.3275911
    %v859 = vadd.f32 %v857, 1.0
    %v860 = vadd.f32 %v858, 1.0
    %v861 = vrcp.pop %v859
    %v862 = vmul.f32 1.0, %v861
    %v863 = vrcp.pop %v860
    %v864 = vmul.f32 1.0, %v863
    %v865 = vmul.f32 %v862, 1.0614054
    %v866 = vmul.f32 %v864, 1.0614054
    %v867 = vadd.f32 %v865, -1.4531521
    %v868 = vadd.f32 %v866, -1.4531521
    %v869 = vmul.f32 %v867, %v862
    %v870 = vmul.f32 %v868, %v864
    %v871 = vadd.f32 %v869, 1.4214138
    %v872 = vadd.f32 %v870, 1.4214138
    %v873 = vmul.f32 %v871, %v862
    %v874 = vmul.f32 %v872, %v864
    %v875 = vadd.f32 %v873, -0.28449672
    %v876 = vadd.f32 %v874, -0.28449672
    %v877 = vmul.f32 %v875, %v862
    %v878 = vmul.f32 %v876, %v864
    %v879 = vadd.f32 %v877, 0.2548296
    %v880 = vadd.f32 %v878, 0.2548296
    %v881 = vmul.f32 %v879, %v862
    %v882 = vmul.f32 %v880, %v864
    %v883 = vsub.f32 0.0, %v855
    %v884 = vsub.f32 0.0, %v856
    %v885 = vmul.f32 %v883, %v855
    %v886 = vmul.f32 %v884, %v856
    %v887 = vmul.f32 %v885, 1.442695
    %v888 = vpow.pop %v887
    %v889 = vmul.f32 %v886, 1.442695
    %v890 = vpow.pop %v889
    %v891 = vmul.f32 %v881, %v888
    %v892 = vmul.f32 %v882, %v890
    %v893 = vsub.f32 1.0, %v891
    %v894 = vsub.f32 1.0, %v892
    %v895 = vmul.f32 %v853, %v893
    %v896 = vmul.f32 %v854, %v894
    %v897 = vadd.f32 %v895, 1.0
    %v898 = vadd.f32 %v896, 1.0
    %v899 = vmul.f32 %v847, %v897
    %v900 = vmul.f32 %v848, %v898
    %s901 = scalar_lea.vmem %s6, 64
    %v902 = vld [vmem:[%s901] sm:$0xff]
    %v903 = vld [vmem:[%s901 + $0x8] sm:$0xff]
    %v904 = vld [vmem:[%s901 + $0x10] sm:$0xff]
    %v905 = vld [vmem:[%s901 + $0x18] sm:$0xff]
    %v906 = vld [vmem:[%s901 + $0x20] sm:$0xff]
    %v907 = vld [vmem:[%s901 + $0x28] sm:$0xff]
    %v908 = vld [vmem:[%s901 + $0x30] sm:$0xff]
    %v909 = vld [vmem:[%s901 + $0x38] sm:$0xff]
    %v910 = vlaneseq
    %v911 = vshrl.u32 %v910, 7
    %v912 = vsub.s32 5, %v911
    %v913 = vrot.slane %v37, %v912
    %v915 = vsel %vm527, %v899, 0
    %v918 = vsel %vm527, %v900, 0
    %920 = vmatprep.subr.mxu0 0.0
    %921 = vmatpush1.msra.mxu0 %v902
    %922 = vmatprep.subr.mxu0 0.0
    %923 = vmatpush1.msra.mxu0 %v903
    %924 = vmatprep.subr.mxu0 0.0
    %925 = vmatpush1.msra.mxu0 %v904
    %926 = vmatprep.subr.mxu0 0.0
    %927 = vmatpush1.msra.mxu0 %v905
    %928 = vmatprep.subr.mxu0 0.0
    %929 = vmatpush1.msra.mxu0 %v906
    %930 = vmatprep.subr.mxu0 0.0
    %931 = vmatpush1.msra.mxu0 %v907
    %932 = vmatprep.subr.mxu0 0.0
    %933 = vmatpush1.msra.mxu0 %v908
    %934 = vmatprep.subr.mxu0 0.0
    %935 = vmatpush1.msra.mxu0 %v909
    %936 = vmatprep.subr.mxu0 0.0
    %937 = vmatpush1.msra.mxu0 0.0
    %938 = vmatprep.subr.mxu0 0.0
    %939 = vmatpush1.msra.mxu0 0.0
    %940 = vmatprep.subr.mxu0 0.0
    %941 = vmatpush1.msra.mxu0 0.0
    %942 = vmatprep.subr.mxu0 0.0
    %943 = vmatpush1.msra.mxu0 0.0
    %944 = vmatprep.subr.mxu0 0.0
    %945 = vmatpush1.msra.mxu0 0.0
    %946 = vmatprep.subr.mxu0 0.0
    %947 = vmatpush1.msra.mxu0 0.0
    %948 = vmatprep.subr.mxu0 0.0
    %949 = vmatpush1.msra.mxu0 0.0
    %950 = vmatprep.subr.mxu0 0.0
    %951 = vmatpush1.msra.mxu0 0.0
    %952 = vmatprep.subr.mxu0 0.0
    %953 = vmatpush1.msra.mxu0 0.0
    %954 = vmatprep.subr.mxu0 0.0
    %955 = vmatpush1.msra.mxu0 0.0
    %956 = vmatprep.subr.mxu0 0.0
    %957 = vmatpush1.msra.mxu0 0.0
    %958 = vmatprep.subr.mxu0 0.0
    %959 = vmatpush1.msra.mxu0 0.0
    %960 = vmatprep.subr.mxu0 0.0
    %961 = vmatpush1.msra.mxu0 0.0
    %962 = vmatprep.subr.mxu0 0.0
    %963 = vmatpush1.msra.mxu0 0.0
    %964 = vmatprep.subr.mxu0 0.0
    %965 = vmatpush1.msra.mxu0 0.0
    %966 = vmatprep.subr.mxu0 0.0
    %967 = vmatpush1.msra.mxu0 0.0
    %968 = vmatprep.subr.mxu0 0.0
    %969 = vmatpush1.msra.mxu0 0.0
    %970 = vmatprep.subr.mxu0 0.0
    %971 = vmatpush1.msra.mxu0 0.0
    %972 = vmatprep.subr.mxu0 0.0
    %973 = vmatpush1.msra.mxu0 0.0
    %974 = vmatprep.subr.mxu0 0.0
    %975 = vmatpush1.msra.mxu0 0.0
    %976 = vmatprep.subr.mxu0 0.0
    %977 = vmatpush1.msra.mxu0 0.0
    %978 = vmatprep.subr.mxu0 0.0
    %979 = vmatpush1.msra.mxu0 0.0
    %980 = vmatprep.subr.mxu0 0.0
    %981 = vmatpush1.msra.mxu0 0.0
    %982 = vmatprep.subr.mxu0 0.0
    %983 = vmatpush1.msra.mxu0 0.0
    %984 = vmatprep.mubr.f32.mxu0 0.0
    %985 = vmatmul.mubr.f32.gmra.mrb[0].mxu0 %v915
    %v986 = vpop.f32.mrb[0].mxu0
    %v987 = vadd.f32 %v913, %v986
    %v988 = vpop.f32.mrb[0].mxu0
    %989 = vmatprep.mubr.f32.mxu0 0.0
    %990 = vmatmul.mubr.f32.gmra.mrb[0].mxu0 %v918
    %v991 = vpop.f32.mrb[0].mxu0
    %v992 = vadd.f32 %v913, %v991
    %v993 = vpop.f32.mrb[0].mxu0
    %994 = vdwg.mxu0
    %v995 = vlaneseq
    %v996 = vshrl.u32 %v995, 7
    %v997 = vsub.s32 6, %v996
    %v998 = vrot.slane %v37, %v997
    %v999 = vmul.f32 %v987, %v998
    %v1000 = vmul.f32 %v992, %v998
    %v1001 = vadd.f32 %v615, %v999
    %v1002 = vadd.f32 %v616, %v1000
    %v1003 = vsel %vm136, %v1001, 0.0
    %1004 = vadd.xlane.f32.xlu0 %v1003
    %v1005 = vpop.xlane.xlu0 %1004
    %v1006 = vsel %vm136, %v1002, 0.0
    %1007 = vadd.xlane.f32.xlu0 %v1006
    %v1008 = vpop.xlane.xlu0 %1007
    %v1009 = vmul.f32 %v1005, %v143
    %v1010 = vmul.f32 %v1008, %v143
    %v1011 = vsub.f32 %v1001, %v1009
    %v1012 = vsub.f32 %v1002, %v1010
    %v1013 = vmul.f32 %v1011, %v1011
    %v1014 = vmul.f32 %v1012, %v1012
    %v1015 = vsel %vm136, %v1013, 0.0
    %1016 = vadd.xlane.f32.xlu0 %v1015
    %v1017 = vpop.xlane.xlu0 %1016
    %v1018 = vsel %vm136, %v1014, 0.0
    %1019 = vadd.xlane.f32.xlu0 %v1018
    %v1020 = vpop.xlane.xlu0 %1019
    %v1021 = vmul.f32 %v1017, %v143
    %v1022 = vmul.f32 %v1020, %v143
    %v1023 = vadd.f32 %v1021, 1e-06
    %v1024 = vadd.f32 %v1022, 1e-06
    %v1025 = vrsqrt.pop %v1023
    %v1026 = vrsqrt.pop %v1024
    %v1027 = vmul.f32 %v1011, %v1025
    %v1028 = vmul.f32 %v1012, %v1026
    %v1029 = vlaneseq
    %v1030 = vshrl.u32 %v1029, 7
    %v1031 = vsub.s32 3, %v1030
    %v1032 = vrot.slane %v36, %v1031
    %v1033 = vmul.f32 %v1027, %v1032
    %v1034 = vmul.f32 %v1028, %v1032
    %v1035 = vlaneseq
    %v1036 = vshrl.u32 %v1035, 7
    %v1037 = vsub.s32 4, %v1036
    %v1038 = vrot.slane %v36, %v1037
    %v1039 = vadd.f32 %v1033, %v1038
    %v1040 = vadd.f32 %v1034, %v1038
    %v1041 = vld [vmem:[%s7] sm:$0xff]
    %v1042 = vld [vmem:[%s7 + $0x8] sm:$0xff]
    %v1043 = vld [vmem:[%s7 + $0x10] sm:$0xff]
    %v1044 = vld [vmem:[%s7 + $0x18] sm:$0xff]
    %v1045 = vlaneseq
    %v1046 = vshrl.u32 %v1045, 7
    %v1047 = vsub.s32 7, %v1046
    %v1048 = vrot.slane %v37, %v1047
    %v1050 = vsel %vm136, %v1039, 0
    %v1053 = vsel %vm136, %v1040, 0
    %1055 = vmatprep.subr.mxu0 0.0
    %1056 = vmatpush1.msra.mxu0 %v1041
    %1057 = vmatprep.subr.mxu0 0.0
    %1058 = vmatpush1.msra.mxu0 %v1042
    %1059 = vmatprep.subr.mxu0 0.0
    %1060 = vmatpush1.msra.mxu0 %v1043
    %1061 = vmatprep.subr.mxu0 0.0
    %1062 = vmatpush1.msra.mxu0 %v1044
    %1063 = vmatprep.subr.mxu0 0.0
    %1064 = vmatpush1.msra.mxu0 0.0
    %1065 = vmatprep.subr.mxu0 0.0
    %1066 = vmatpush1.msra.mxu0 0.0
    %1067 = vmatprep.subr.mxu0 0.0
    %1068 = vmatpush1.msra.mxu0 0.0
    %1069 = vmatprep.subr.mxu0 0.0
    %1070 = vmatpush1.msra.mxu0 0.0
    %1071 = vmatprep.subr.mxu0 0.0
    %1072 = vmatpush1.msra.mxu0 0.0
    %1073 = vmatprep.subr.mxu0 0.0
    %1074 = vmatpush1.msra.mxu0 0.0
    %1075 = vmatprep.subr.mxu0 0.0
    %1076 = vmatpush1.msra.mxu0 0.0
    %1077 = vmatprep.subr.mxu0 0.0
    %1078 = vmatpush1.msra.mxu0 0.0
    %1079 = vmatprep.subr.mxu0 0.0
    %1080 = vmatpush1.msra.mxu0 0.0
    %1081 = vmatprep.subr.mxu0 0.0
    %1082 = vmatpush1.msra.mxu0 0.0
    %1083 = vmatprep.subr.mxu0 0.0
    %1084 = vmatpush1.msra.mxu0 0.0
    %1085 = vmatprep.subr.mxu0 0.0
    %1086 = vmatpush1.msra.mxu0 0.0
    %1087 = vmatprep.subr.mxu0 0.0
    %1088 = vmatpush1.msra.mxu0 0.0
    %1089 = vmatprep.subr.mxu0 0.0
    %1090 = vmatpush1.msra.mxu0 0.0
    %1091 = vmatprep.subr.mxu0 0.0
    %1092 = vmatpush1.msra.mxu0 0.0
    %1093 = vmatprep.subr.mxu0 0.0
    %1094 = vmatpush1.msra.mxu0 0.0
    %1095 = vmatprep.subr.mxu0 0.0
    %1096 = vmatpush1.msra.mxu0 0.0
    %1097 = vmatprep.subr.mxu0 0.0
    %1098 = vmatpush1.msra.mxu0 0.0
    %1099 = vmatprep.subr.mxu0 0.0
    %1100 = vmatpush1.msra.mxu0 0.0
    %1101 = vmatprep.subr.mxu0 0.0
    %1102 = vmatpush1.msra.mxu0 0.0
    %1103 = vmatprep.subr.mxu0 0.0
    %1104 = vmatpush1.msra.mxu0 0.0
    %1105 = vmatprep.subr.mxu0 0.0
    %1106 = vmatpush1.msra.mxu0 0.0
    %1107 = vmatprep.subr.mxu0 0.0
    %1108 = vmatpush1.msra.mxu0 0.0
    %1109 = vmatprep.subr.mxu0 0.0
    %1110 = vmatpush1.msra.mxu0 0.0
    %1111 = vmatprep.subr.mxu0 0.0
    %1112 = vmatpush1.msra.mxu0 0.0
    %1113 = vmatprep.subr.mxu0 0.0
    %1114 = vmatpush1.msra.mxu0 0.0
    %1115 = vmatprep.subr.mxu0 0.0
    %1116 = vmatpush1.msra.mxu0 0.0
    %1117 = vmatprep.subr.mxu0 0.0
    %1118 = vmatpush1.msra.mxu0 0.0
    %1119 = vmatprep.mubr.f32.mxu0 0.0
    %1120 = vmatmul.mubr.f32.gmra.mrb[0].mxu0 %v1050
    %v1121 = vpop.f32.mrb[0].mxu0
    %v1122 = vadd.f32 %v1048, %v1121
    %v1123 = vpop.f32.mrb[0].mxu0
    %1124 = vmatprep.mubr.f32.mxu0 0.0
    %1125 = vmatmul.mubr.f32.gmra.mrb[0].mxu0 %v1053
    %v1126 = vpop.f32.mrb[0].mxu0
    %v1127 = vadd.f32 %v1048, %v1126
    %v1128 = vpop.f32.mrb[0].mxu0
    %1129 = vdwg.mxu0
    %v1130 = vmul.f32 %v1122, 1.442695
    %v1131 = vpow.pop %v1130
    %v1132 = vmul.f32 %v1127, 1.442695
    %v1133 = vpow.pop %v1132
    %v1134 = vmin.f32 %v1131, 100.0
    %v1135 = vmin.f32 %v1133, 100.0
    %v1136 = vand.u32 2147483647, %v1122
    %vm1137 = vcmp.le.f32.partialorder %v1136, 0.7853982
    %vm1138 = vcmp.lt.s32.totalorder %v1122, 0
    %v1139 = vand.u32 %v1122, 2139095040
    %v1140 = vshrl.u32 %v1139, 23
    %v1141 = vsub.s32 %v1140, 127
    %v1142 = vand.u32 2147483647, %v1122
    %v1143 = vand.u32 %v1142, 8388607
    %v1144 = vor.u32 %v1143, 8388608
    %v1145 = vsub.s32 0, %v1144
    %v1146 = vadd.s32 %v1141, 1
    %vm1147 = vcmp.gt.s32.totalorder %v1146, 0
    %v1148 = vsel %vm1147, %v1146, 0
    %v1149 = vshrl.u32 %v1148, 5
    %v1150 = vand.u32 %v1148, 31
    %v1151 = vsub.s32 32, %v1150
    %v1152 = vshrl.u32 683565275, %v1151
    %v1153 = vshll.u32 683565275, %v1150
    %v1154 = vshrl.u32 2475754826, %v1151
    %v1155 = vor.u32 %v1153, %v1154
    %v1156 = vshll.u32 2475754826, %v1150
    %v1157 = vshrl.u32 2131351028, %v1151
    %v1158 = vor.u32 %v1156, %v1157
    %v1159 = vshll.u32 2131351028, %v1150
    %v1160 = vshrl.u32 2102212464, %v1151
    %v1161 = vor.u32 %v1159, %v1160
    %v1162 = vshll.u32 2102212464, %v1150
    %v1163 = vshrl.u32 920167782, %v1151
    %v1164 = vor.u32 %v1162, %v1163
    %v1165 = vshll.u32 920167782, %v1150
    %v1166 = vshrl.u32 1326507024, %v1151
    %v1167 = vor.u32 %v1165, %v1166
    %vm1168 = vcmp.lt.s32.totalorder %v1149, 1
    %vm1169 = vcmp.lt.s32.totalorder %v1149, 2
    %vm1170 = vcmp.lt.s32.totalorder %v1149, 3
    %vm1171 = vcmp.lt.s32.totalorder %v1149, 4
    %v1172 = vsel %vm1168, %v1152, %v1155
    %v1173 = vsel %vm1171, %v1161, 2102212464
    %v1174 = vsel %vm1170, %v1158, %v1173
    %v1175 = vsel %vm1169, %v1172, %v1174
    %v1176 = vsel %vm1168, %v1155, %v1158
    %v1177 = vsel %vm1171, %v1164, 920167782
    %v1178 = vsel %vm1170, %v1161, %v1177
    %v1179 = vsel %vm1169, %v1176, %v1178
    %v1180 = vsel %vm1168, %v1158, %v1161
    %v1181 = vsel %vm1171, %v1167, 1326507024
    %v1182 = vsel %vm1170, %v1164, %v1181
    %v1183 = vsel %vm1169, %v1180, %v1182
    %v1184 = vshll.u32 %v1144, 8
    %v1185 = vmul.u32.u64.compose %v1184, %v1183
    %v1186 = vextract.low.u32 %v1185
    %v1187 = vextract.high.u32 %v1185
    %v1188 = vmul.u32.u64.compose %v1184, %v1179
    %v1189 = vextract.low.u32 %v1188
    %v1190 = vextract.high.u32 %v1188
    %v1191 = vmul.u32 %v1184, %v1175
    %v1192 = vadd.s32 %v1187, %v1189
    %vm1193 = vc.u32 %v1187, %v1189
    %v1194 = vadd.s32 %v1190, 1
    %v1195 = vsel %vm1193, %v1194, %v1190
    %v1196 = vadd.s32 %v1191, %v1195
    %v1197 = vadd.s32 %v1196, 536870912
    %v1198 = vshrl.u32 %v1197, 30
    %v1199 = vshll.u32 %v1198, 30
    %v1200 = vsub.s32 %v1196, %v1199
    %vm1201 = vcmp.lt.s32.totalorder %v1200, 0
    %v1202 = vsub.s32 0, %v1200
    %v1203 = vsel %vm1201, %v1202, %v1200
    %v1204 = vclz %v1203
    %v1205 = vsub.s32 %v1204, 2
    %vm1206 = vcmp.gt.s32.totalorder 0, %v1205
    %v1207 = vsel %vm1206, 0, %v1205
    %v1208 = vsub.s32 32, %v1207
    %v1209 = vshll.u32 %v1200, %v1207
    %v1210 = vshrl.u32 %v1192, %v1208
    %v1211 = vor.u32 %v1209, %v1210
    %v1212 = vsub.s32 4294967266, %v1207
    %v1213 = vadd.s32 %v1212, 127
    %v1214 = vshll.u32 %v1213, 23
    %v1215 = vor.u32 4788187, %v1214
    %v1216 = vand.u32 2147483647, %v1215
    %v1218 = vcvt.s32.f32 %v1211
    %v1219 = vmul.f32 %v1218, %v1216
    %v1220 = vxor.u32 %v1219, 2147483648
    %v1221 = vsel %vm1138, %v1220, %v1219
    %v1222 = vsub.s32 4, %v1198
    %v1223 = vsel %vm1138, %v1222, %v1198
    %v1224 = vsel %vm1137, %v1122, %v1221
    %v1225 = vsel %vm1137, 0, %v1223
    %v1226 = vcosq.f32.pop %v1224
    %v1227 = vsinq.f32.pop %v1224
    %vm1228 = vweird.f32 %v1122
    %v1229 = vand.u32 %v1225, 3
    %vm1230 = vcmp.lt.s32.totalorder %v1229, 2
    %vm1231 = vcmp.eq.s32.totalorder %v1229, 0
    %v1232 = vxor.u32 %v1227, 2147483648
    %v1233 = vsel %vm1231, %v1226, %v1232
    %vm1234 = vcmp.eq.s32.totalorder %v1229, 2
    %v1235 = vxor.u32 %v1226, 2147483648
    %v1236 = vsel %vm1234, %v1235, %v1227
    %v1237 = vsel %vm1230, %v1233, %v1236
    %v1238 = vsel %vm1228, nan, %v1237
    %v1239 = vand.u32 2147483647, %v1127
    %vm1240 = vcmp.le.f32.partialorder %v1239, 0.7853982
    %vm1241 = vcmp.lt.s32.totalorder %v1127, 0
    %v1242 = vand.u32 %v1127, 2139095040
    %v1243 = vshrl.u32 %v1242, 23
    %v1244 = vsub.s32 %v1243, 127
    %v1245 = vand.u32 2147483647, %v1127
    %v1246 = vand.u32 %v1245, 8388607
    %v1247 = vor.u32 %v1246, 8388608
    %v1248 = vsub.s32 0, %v1247
    %v1249 = vadd.s32 %v1244, 1
    %vm1250 = vcmp.gt.s32.totalorder %v1249, 0
    %v1251 = vsel %vm1250, %v1249, 0
    %v1252 = vshrl.u32 %v1251, 5
    %v1253 = vand.u32 %v1251, 31
    %v1254 = vsub.s32 32, %v1253
    %v1255 = vshrl.u32 683565275, %v1254
    %v1256 = vshll.u32 683565275, %v1253
    %v1257 = vshrl.u32 2475754826, %v1254
    %v1258 = vor.u32 %v1256, %v1257
    %v1259 = vshll.u32 2475754826, %v1253
    %v1260 = vshrl.u32 2131351028, %v1254
    %v1261 = vor.u32 %v1259, %v1260
    %v1262 = vshll.u32 2131351028, %v1253
    %v1263 = vshrl.u32 2102212464, %v1254
    %v1264 = vor.u32 %v1262, %v1263
    %v1265 = vshll.u32 2102212464, %v1253
    %v1266 = vshrl.u32 920167782, %v1254
    %v1267 = vor.u32 %v1265, %v1266
    %v1268 = vshll.u32 920167782, %v1253
    %v1269 = vshrl.u32 1326507024, %v1254
    %v1270 = vor.u32 %v1268, %v1269
    %vm1271 = vcmp.lt.s32.totalorder %v1252, 1
    %vm1272 = vcmp.lt.s32.totalorder %v1252, 2
    %vm1273 = vcmp.lt.s32.totalorder %v1252, 3
    %vm1274 = vcmp.lt.s32.totalorder %v1252, 4
    %v1275 = vsel %vm1271, %v1255, %v1258
    %v1276 = vsel %vm1274, %v1264, 2102212464
    %v1277 = vsel %vm1273, %v1261, %v1276
    %v1278 = vsel %vm1272, %v1275, %v1277
    %v1279 = vsel %vm1271, %v1258, %v1261
    %v1280 = vsel %vm1274, %v1267, 920167782
    %v1281 = vsel %vm1273, %v1264, %v1280
    %v1282 = vsel %vm1272, %v1279, %v1281
    %v1283 = vsel %vm1271, %v1261, %v1264
    %v1284 = vsel %vm1274, %v1270, 1326507024
    %v1285 = vsel %vm1273, %v1267, %v1284
    %v1286 = vsel %vm1272, %v1283, %v1285
    %v1287 = vshll.u32 %v1247, 8
    %v1288 = vmul.u32.u64.compose %v1287, %v1286
    %v1289 = vextract.low.u32 %v1288
    %v1290 = vextract.high.u32 %v1288
    %v1291 = vmul.u32.u64.compose %v1287, %v1282
    %v1292 = vextract.low.u32 %v1291
    %v1293 = vextract.high.u32 %v1291
    %v1294 = vmul.u32 %v1287, %v1278
    %v1295 = vadd.s32 %v1290, %v1292
    %vm1296 = vc.u32 %v1290, %v1292
    %v1297 = vadd.s32 %v1293, 1
    %v1298 = vsel %vm1296, %v1297, %v1293
    %v1299 = vadd.s32 %v1294, %v1298
    %v1300 = vadd.s32 %v1299, 536870912
    %v1301 = vshrl.u32 %v1300, 30
    %v1302 = vshll.u32 %v1301, 30
    %v1303 = vsub.s32 %v1299, %v1302
    %vm1304 = vcmp.lt.s32.totalorder %v1303, 0
    %v1305 = vsub.s32 0, %v1303
    %v1306 = vsel %vm1304, %v1305, %v1303
    %v1307 = vclz %v1306
    %v1308 = vsub.s32 %v1307, 2
    %vm1309 = vcmp.gt.s32.totalorder 0, %v1308
    %v1310 = vsel %vm1309, 0, %v1308
    %v1311 = vsub.s32 32, %v1310
    %v1312 = vshll.u32 %v1303, %v1310
    %v1313 = vshrl.u32 %v1295, %v1311
    %v1314 = vor.u32 %v1312, %v1313
    %v1315 = vsub.s32 4294967266, %v1310
    %v1316 = vadd.s32 %v1315, 127
    %v1317 = vshll.u32 %v1316, 23
    %v1318 = vor.u32 4788187, %v1317
    %v1319 = vand.u32 2147483647, %v1318
    %v1321 = vcvt.s32.f32 %v1314
    %v1322 = vmul.f32 %v1321, %v1319
    %v1323 = vxor.u32 %v1322, 2147483648
    %v1324 = vsel %vm1241, %v1323, %v1322
    %v1325 = vsub.s32 4, %v1301
    %v1326 = vsel %vm1241, %v1325, %v1301
    %v1327 = vsel %vm1240, %v1127, %v1324
    %v1328 = vsel %vm1240, 0, %v1326
    %v1329 = vcosq.f32.pop %v1327
    %v1330 = vsinq.f32.pop %v1327
    %vm1331 = vweird.f32 %v1127
    %v1332 = vand.u32 %v1328, 3
    %vm1333 = vcmp.lt.s32.totalorder %v1332, 2
    %vm1334 = vcmp.eq.s32.totalorder %v1332, 0
    %v1335 = vxor.u32 %v1330, 2147483648
    %v1336 = vsel %vm1334, %v1329, %v1335
    %vm1337 = vcmp.eq.s32.totalorder %v1332, 2
    %v1338 = vxor.u32 %v1329, 2147483648
    %v1339 = vsel %vm1337, %v1338, %v1330
    %v1340 = vsel %vm1333, %v1336, %v1339
    %v1341 = vsel %vm1331, nan, %v1340
    %1344 = vrot.lane.b32.xlu0 %v1238, 119
    %v1345 = vpop.permute.xlu0 %1344
    %1346 = vrot.lane.b32.xlu0 %v1341, 119
    %v1347 = vpop.permute.xlu0 %1346
    %v1350 = vmul.f32 %v1134, %v1345
    %v1351 = vmul.f32 %v1135, %v1347
    %v1352 = vand.u32 2147483647, %v1122
    %vm1353 = vcmp.le.f32.partialorder %v1352, 0.7853982
    %vm1354 = vcmp.lt.s32.totalorder %v1122, 0
    %v1355 = vand.u32 %v1122, 2139095040
    %v1356 = vshrl.u32 %v1355, 23
    %v1357 = vsub.s32 %v1356, 127
    %v1358 = vand.u32 2147483647, %v1122
    %v1359 = vand.u32 %v1358, 8388607
    %v1360 = vor.u32 %v1359, 8388608
    %v1361 = vsub.s32 0, %v1360
    %v1362 = vadd.s32 %v1357, 1
    %vm1363 = vcmp.gt.s32.totalorder %v1362, 0
    %v1364 = vsel %vm1363, %v1362, 0
    %v1365 = vshrl.u32 %v1364, 5
    %v1366 = vand.u32 %v1364, 31
    %v1367 = vsub.s32 32, %v1366
    %v1368 = vshrl.u32 683565275, %v1367
    %v1369 = vshll.u32 683565275, %v1366
    %v1370 = vshrl.u32 2475754826, %v1367
    %v1371 = vor.u32 %v1369, %v1370
    %v1372 = vshll.u32 2475754826, %v1366
    %v1373 = vshrl.u32 2131351028, %v1367
    %v1374 = vor.u32 %v1372, %v1373
    %v1375 = vshll.u32 2131351028, %v1366
    %v1376 = vshrl.u32 2102212464, %v1367
    %v1377 = vor.u32 %v1375, %v1376
    %v1378 = vshll.u32 2102212464, %v1366
    %v1379 = vshrl.u32 920167782, %v1367
    %v1380 = vor.u32 %v1378, %v1379
    %v1381 = vshll.u32 920167782, %v1366
    %v1382 = vshrl.u32 1326507024, %v1367
    %v1383 = vor.u32 %v1381, %v1382
    %vm1384 = vcmp.lt.s32.totalorder %v1365, 1
    %vm1385 = vcmp.lt.s32.totalorder %v1365, 2
    %vm1386 = vcmp.lt.s32.totalorder %v1365, 3
    %vm1387 = vcmp.lt.s32.totalorder %v1365, 4
    %v1388 = vsel %vm1384, %v1368, %v1371
    %v1389 = vsel %vm1387, %v1377, 2102212464
    %v1390 = vsel %vm1386, %v1374, %v1389
    %v1391 = vsel %vm1385, %v1388, %v1390
    %v1392 = vsel %vm1384, %v1371, %v1374
    %v1393 = vsel %vm1387, %v1380, 920167782
    %v1394 = vsel %vm1386, %v1377, %v1393
    %v1395 = vsel %vm1385, %v1392, %v1394
    %v1396 = vsel %vm1384, %v1374, %v1377
    %v1397 = vsel %vm1387, %v1383, 1326507024
    %v1398 = vsel %vm1386, %v1380, %v1397
    %v1399 = vsel %vm1385, %v1396, %v1398
    %v1400 = vshll.u32 %v1360, 8
    %v1401 = vmul.u32.u64.compose %v1400, %v1399
    %v1402 = vextract.low.u32 %v1401
    %v1403 = vextract.high.u32 %v1401
    %v1404 = vmul.u32.u64.compose %v1400, %v1395
    %v1405 = vextract.low.u32 %v1404
    %v1406 = vextract.high.u32 %v1404
    %v1407 = vmul.u32 %v1400, %v1391
    %v1408 = vadd.s32 %v1403, %v1405
    %vm1409 = vc.u32 %v1403, %v1405
    %v1410 = vadd.s32 %v1406, 1
    %v1411 = vsel %vm1409, %v1410, %v1406
    %v1412 = vadd.s32 %v1407, %v1411
    %v1413 = vadd.s32 %v1412, 536870912
    %v1414 = vshrl.u32 %v1413, 30
    %v1415 = vshll.u32 %v1414, 30
    %v1416 = vsub.s32 %v1412, %v1415
    %vm1417 = vcmp.lt.s32.totalorder %v1416, 0
    %v1418 = vsub.s32 0, %v1416
    %v1419 = vsel %vm1417, %v1418, %v1416
    %v1420 = vclz %v1419
    %v1421 = vsub.s32 %v1420, 2
    %vm1422 = vcmp.gt.s32.totalorder 0, %v1421
    %v1423 = vsel %vm1422, 0, %v1421
    %v1424 = vsub.s32 32, %v1423
    %v1425 = vshll.u32 %v1416, %v1423
    %v1426 = vshrl.u32 %v1408, %v1424
    %v1427 = vor.u32 %v1425, %v1426
    %v1428 = vsub.s32 4294967266, %v1423
    %v1429 = vadd.s32 %v1428, 127
    %v1430 = vshll.u32 %v1429, 23
    %v1431 = vor.u32 4788187, %v1430
    %v1432 = vand.u32 2147483647, %v1431
    %v1434 = vcvt.s32.f32 %v1427
    %v1435 = vmul.f32 %v1434, %v1432
    %v1436 = vxor.u32 %v1435, 2147483648
    %v1437 = vsel %vm1354, %v1436, %v1435
    %v1438 = vsub.s32 4, %v1414
    %v1439 = vsel %vm1354, %v1438, %v1414
    %v1440 = vsel %vm1353, %v1122, %v1437
    %v1441 = vsel %vm1353, 0, %v1439
    %v1442 = vcosq.f32.pop %v1440
    %v1443 = vsinq.f32.pop %v1440
    %vm1444 = vweird.f32 %v1122
    %v1445 = vadd.s32 %v1441, 3
    %v1446 = vand.u32 %v1445, 3
    %vm1447 = vcmp.lt.s32.totalorder %v1446, 2
    %vm1448 = vcmp.eq.s32.totalorder %v1446, 0
    %v1449 = vxor.u32 %v1443, 2147483648
    %v1450 = vsel %vm1448, %v1442, %v1449
    %vm1451 = vcmp.eq.s32.totalorder %v1446, 2
    %v1452 = vxor.u32 %v1442, 2147483648
    %v1453 = vsel %vm1451, %v1452, %v1443
    %v1454 = vsel %vm1447, %v1450, %v1453
    %v1455 = vsel %vm1444, nan, %v1454
    %v1456 = vand.u32 2147483647, %v1127
    %vm1457 = vcmp.le.f32.partialorder %v1456, 0.7853982
    %vm1458 = vcmp.lt.s32.totalorder %v1127, 0
    %v1459 = vand.u32 %v1127, 2139095040
    %v1460 = vshrl.u32 %v1459, 23
    %v1461 = vsub.s32 %v1460, 127
    %v1462 = vand.u32 2147483647, %v1127
    %v1463 = vand.u32 %v1462, 8388607
    %v1464 = vor.u32 %v1463, 8388608
    %v1465 = vsub.s32 0, %v1464
    %v1466 = vadd.s32 %v1461, 1
    %vm1467 = vcmp.gt.s32.totalorder %v1466, 0
    %v1468 = vsel %vm1467, %v1466, 0
    %v1469 = vshrl.u32 %v1468, 5
    %v1470 = vand.u32 %v1468, 31
    %v1471 = vsub.s32 32, %v1470
    %v1472 = vshrl.u32 683565275, %v1471
    %v1473 = vshll.u32 683565275, %v1470
    %v1474 = vshrl.u32 2475754826, %v1471
    %v1475 = vor.u32 %v1473, %v1474
    %v1476 = vshll.u32 2475754826, %v1470
    %v1477 = vshrl.u32 2131351028, %v1471
    %v1478 = vor.u32 %v1476, %v1477
    %v1479 = vshll.u32 2131351028, %v1470
    %v1480 = vshrl.u32 2102212464, %v1471
    %v1481 = vor.u32 %v1479, %v1480
    %v1482 = vshll.u32 2102212464, %v1470
    %v1483 = vshrl.u32 920167782, %v1471
    %v1484 = vor.u32 %v1482, %v1483
    %v1485 = vshll.u32 920167782, %v1470
    %v1486 = vshrl.u32 1326507024, %v1471
    %v1487 = vor.u32 %v1485, %v1486
    %vm1488 = vcmp.lt.s32.totalorder %v1469, 1
    %vm1489 = vcmp.lt.s32.totalorder %v1469, 2
    %vm1490 = vcmp.lt.s32.totalorder %v1469, 3
    %vm1491 = vcmp.lt.s32.totalorder %v1469, 4
    %v1492 = vsel %vm1488, %v1472, %v1475
    %v1493 = vsel %vm1491, %v1481, 2102212464
    %v1494 = vsel %vm1490, %v1478, %v1493
    %v1495 = vsel %vm1489, %v1492, %v1494
    %v1496 = vsel %vm1488, %v1475, %v1478
    %v1497 = vsel %vm1491, %v1484, 920167782
    %v1498 = vsel %vm1490, %v1481, %v1497
    %v1499 = vsel %vm1489, %v1496, %v1498
    %v1500 = vsel %vm1488, %v1478, %v1481
    %v1501 = vsel %vm1491, %v1487, 1326507024
    %v1502 = vsel %vm1490, %v1484, %v1501
    %v1503 = vsel %vm1489, %v1500, %v1502
    %v1504 = vshll.u32 %v1464, 8
    %v1505 = vmul.u32.u64.compose %v1504, %v1503
    %v1506 = vextract.low.u32 %v1505
    %v1507 = vextract.high.u32 %v1505
    %v1508 = vmul.u32.u64.compose %v1504, %v1499
    %v1509 = vextract.low.u32 %v1508
    %v1510 = vextract.high.u32 %v1508
    %v1511 = vmul.u32 %v1504, %v1495
    %v1512 = vadd.s32 %v1507, %v1509
    %vm1513 = vc.u32 %v1507, %v1509
    %v1514 = vadd.s32 %v1510, 1
    %v1515 = vsel %vm1513, %v1514, %v1510
    %v1516 = vadd.s32 %v1511, %v1515
    %v1517 = vadd.s32 %v1516, 536870912
    %v1518 = vshrl.u32 %v1517, 30
    %v1519 = vshll.u32 %v1518, 30
    %v1520 = vsub.s32 %v1516, %v1519
    %vm1521 = vcmp.lt.s32.totalorder %v1520, 0
    %v1522 = vsub.s32 0, %v1520
    %v1523 = vsel %vm1521, %v1522, %v1520
    %v1524 = vclz %v1523
    %v1525 = vsub.s32 %v1524, 2
    %vm1526 = vcmp.gt.s32.totalorder 0, %v1525
    %v1527 = vsel %vm1526, 0, %v1525
    %v1528 = vsub.s32 32, %v1527
    %v1529 = vshll.u32 %v1520, %v1527
    %v1530 = vshrl.u32 %v1512, %v1528
    %v1531 = vor.u32 %v1529, %v1530
    %v1532 = vsub.s32 4294967266, %v1527
    %v1533 = vadd.s32 %v1532, 127
    %v1534 = vshll.u32 %v1533, 23
    %v1535 = vor.u32 4788187, %v1534
    %v1536 = vand.u32 2147483647, %v1535
    %v1538 = vcvt.s32.f32 %v1531
    %v1539 = vmul.f32 %v1538, %v1536
    %v1540 = vxor.u32 %v1539, 2147483648
    %v1541 = vsel %vm1458, %v1540, %v1539
    %v1542 = vsub.s32 4, %v1518
    %v1543 = vsel %vm1458, %v1542, %v1518
    %v1544 = vsel %vm1457, %v1127, %v1541
    %v1545 = vsel %vm1457, 0, %v1543
    %v1546 = vcosq.f32.pop %v1544
    %v1547 = vsinq.f32.pop %v1544
    %vm1548 = vweird.f32 %v1127
    %v1549 = vadd.s32 %v1545, 3
    %v1550 = vand.u32 %v1549, 3
    %vm1551 = vcmp.lt.s32.totalorder %v1550, 2
    %vm1552 = vcmp.eq.s32.totalorder %v1550, 0
    %v1553 = vxor.u32 %v1547, 2147483648
    %v1554 = vsel %vm1552, %v1546, %v1553
    %vm1555 = vcmp.eq.s32.totalorder %v1550, 2
    %v1556 = vxor.u32 %v1546, 2147483648
    %v1557 = vsel %vm1555, %v1556, %v1547
    %v1558 = vsel %vm1551, %v1554, %v1557
    %v1559 = vsel %vm1548, nan, %v1558
    %1562 = vrot.lane.b32.xlu0 %v1455, 119
    %v1563 = vpop.permute.xlu0 %1562
    %1564 = vrot.lane.b32.xlu0 %v1559, 119
    %v1565 = vpop.permute.xlu0 %1564
    %v1568 = vmul.f32 %v1134, %v1563
    %v1569 = vmul.f32 %v1135, %v1565
    %1572 = vrot.lane.b32.xlu0 %v1568, 9
    %v1573 = vpop.permute.xlu0 %1572
    %1574 = vrot.lane.b32.xlu0 %v1569, 9
    %v1575 = vpop.permute.xlu0 %1574
    %vm1578 = vcmask 72704
    %v1579 = vsel %vm1578, %v1350, %v1573
    %v1580 = vsel %vm1578, %v1351, %v1575
    %1581 = vset.pattern.permute.xlu0 7
    %1582 = vperm.xlu0 %1581, %v38
    %v1583 = vpop.permute.xlu0 %1582
    %1585 = vset.pattern.permute.xlu0 7
    %1586 = vperm.xlu0 %1585, %v39
    %v1587 = vpop.permute.xlu0 %1586
    %v1589 = vmul.f32 %v1579, %v1583
    %v1590 = vmul.f32 %v1580, %v1587
    %1591 = vset.pattern.permute.xlu0 8
    %1592 = vperm.xlu0 %1591, %v38
    %v1593 = vpop.permute.xlu0 %1592
    %1595 = vset.pattern.permute.xlu0 8
    %1596 = vperm.xlu0 %1595, %v39
    %v1597 = vpop.permute.xlu0 %1596
    %v1599 = vmul.f32 %v1579, %v1593
    %v1600 = vmul.f32 %v1580, %v1597
    %1601 = vset.pattern.permute.xlu0 9
    %1602 = vperm.xlu0 %1601, %v38
    %v1603 = vpop.permute.xlu0 %1602
    %1605 = vset.pattern.permute.xlu0 9
    %1606 = vperm.xlu0 %1605, %v39
    %v1607 = vpop.permute.xlu0 %1606
    %v1609 = vmul.f32 %v1579, %v1603
    %v1610 = vmul.f32 %v1580, %v1607
    %1611 = vset.pattern.permute.xlu0 10
    %1612 = vperm.xlu0 %1611, %v38
    %v1613 = vpop.permute.xlu0 %1612
    %1615 = vset.pattern.permute.xlu0 10
    %1616 = vperm.xlu0 %1615, %v39
    %v1617 = vpop.permute.xlu0 %1616
    %v1619 = vmul.f32 %v1579, %v1613
    %v1620 = vmul.f32 %v1580, %v1617
    %1621 = vset.pattern.permute.xlu0 11
    %1622 = vperm.xlu0 %1621, %v38
    %v1623 = vpop.permute.xlu0 %1622
    %1625 = vset.pattern.permute.xlu0 11
    %1626 = vperm.xlu0 %1625, %v39
    %v1627 = vpop.permute.xlu0 %1626
    %v1629 = vmul.f32 %v1579, %v1623
    %v1630 = vmul.f32 %v1580, %v1627
    %1631 = vset.pattern.permute.xlu0 12
    %1632 = vperm.xlu0 %1631, %v38
    %v1633 = vpop.permute.xlu0 %1632
    %1635 = vset.pattern.permute.xlu0 12
    %1636 = vperm.xlu0 %1635, %v39
    %v1637 = vpop.permute.xlu0 %1636
    %v1639 = vmul.f32 %v1579, %v1633
    %v1640 = vmul.f32 %v1580, %v1637
    %1641 = vset.pattern.permute.xlu0 13
    %1642 = vperm.xlu0 %1641, %v38
    %v1643 = vpop.permute.xlu0 %1642
    %1645 = vset.pattern.permute.xlu0 13
    %1646 = vperm.xlu0 %1645, %v39
    %v1647 = vpop.permute.xlu0 %1646
    %v1649 = vmul.f32 %v1579, %v1643
    %v1650 = vmul.f32 %v1580, %v1647
    %1651 = vset.pattern.permute.xlu0 14
    %1652 = vperm.xlu0 %1651, %v38
    %v1653 = vpop.permute.xlu0 %1652
    %1655 = vset.pattern.permute.xlu0 14
    %1656 = vperm.xlu0 %1655, %v39
    %v1657 = vpop.permute.xlu0 %1656
    %v1659 = vmul.f32 %v1579, %v1653
    %v1660 = vmul.f32 %v1580, %v1657
    %1663 = vrot.lane.b32.xlu0 %v1599, 18
    %v1664 = vpop.permute.xlu0 %1663
    %1665 = vrot.lane.b32.xlu0 %v1600, 18
    %v1666 = vpop.permute.xlu0 %1665
    %1671 = vrot.lane.b32.xlu0 %v1609, 36
    %v1672 = vpop.permute.xlu0 %1671
    %1673 = vrot.lane.b32.xlu0 %v1610, 36
    %v1674 = vpop.permute.xlu0 %1673
    %1679 = vrot.lane.b32.xlu0 %v1619, 54
    %v1680 = vpop.permute.xlu0 %1679
    %1681 = vrot.lane.b32.xlu0 %v1620, 54
    %v1682 = vpop.permute.xlu0 %1681
    %1687 = vrot.lane.b32.xlu0 %v1629, 72
    %v1688 = vpop.permute.xlu0 %1687
    %1689 = vrot.lane.b32.xlu0 %v1630, 72
    %v1690 = vpop.permute.xlu0 %1689
    %1695 = vrot.lane.b32.xlu0 %v1639, 90
    %v1696 = vpop.permute.xlu0 %1695
    %1697 = vrot.lane.b32.xlu0 %v1640, 90
    %v1698 = vpop.permute.xlu0 %1697
    %1703 = vrot.lane.b32.xlu0 %v1649, 108
    %v1704 = vpop.permute.xlu0 %1703
    %1705 = vrot.lane.b32.xlu0 %v1650, 108
    %v1706 = vpop.permute.xlu0 %1705
    %1711 = vrot.lane.b32.xlu0 %v1659, 126
    %v1712 = vpop.permute.xlu0 %1711
    %1713 = vrot.lane.b32.xlu0 %v1660, 126
    %v1714 = vpop.permute.xlu0 %1713
    %vm1717 = vcmask 146432
    %v1718 = vsel %vm1717, %v1589, %v1664
    %v1719 = vsel %vm1717, %v1590, %v1666
    %vm1720 = vcmask 293888
    %v1721 = vsel %vm1720, %v1718, %v1672
    %v1722 = vsel %vm1720, %v1719, %v1674
    %vm1723 = vcmask 441344
    %v1724 = vsel %vm1723, %v1721, %v1680
    %v1725 = vsel %vm1723, %v1722, %v1682
    %vm1726 = vcmask 588800
    %v1727 = vsel %vm1726, %v1724, %v1688
    %v1728 = vsel %vm1726, %v1725, %v1690
    %vm1729 = vcmask 736256
    %v1730 = vsel %vm1729, %v1727, %v1696
    %v1731 = vsel %vm1729, %v1728, %v1698
    %vm1732 = vcmask 883712
    %v1733 = vsel %vm1732, %v1730, %v1704
    %v1734 = vsel %vm1732, %v1731, %v1706
    %vm1735 = vcmask 1031168
    %v1736 = vsel %vm1735, %v1733, %v1712
    %v1737 = vsel %vm1735, %v1734, %v1714
    %v1738 = vlaneseq
    %v1739 = vand.u32 %v1738, 127
    %v1740 = vmul.u32 %v186, 8
    %vm1741 = vcmp.ge.s32.totalorder %v1739, %v1740
    %v1742 = vadd.s32 %v186, 1
    %v1743 = vmul.u32 %v1742, 8
    %vm1744 = vcmp.lt.s32.totalorder %v1739, %v1743
    %vm1745 = vmand %vm1741, %vm1744
    %v1746 = vsel %vm1745, 1, 0
    %v1747 = vcvt.s32.f32 %v1746
    %vm1748 = vcmask 130048
    %v1750 = vsel %vm1748, %v1747, 0
    %1752 = vmatprep.subr.mxu0 %v1712
    %1753 = vmatpush1.msra.mxu0 %v1736
    %1754 = vmatprep.subr.mxu0 %v1714
    %1755 = vmatpush1.msra.mxu0 %v1737
    %1756 = vmatprep.subr.mxu0 0.0
    %1757 = vmatpush1.msra.mxu0 0.0
    %1758 = vmatprep.subr.mxu0 0.0
    %1759 = vmatpush1.msra.mxu0 0.0
    %1760 = vmatprep.subr.mxu0 0.0
    %1761 = vmatpush1.msra.mxu0 0.0
    %1762 = vmatprep.subr.mxu0 0.0
    %1763 = vmatpush1.msra.mxu0 0.0
    %1764 = vmatprep.subr.mxu0 0.0
    %1765 = vmatpush1.msra.mxu0 0.0
    %1766 = vmatprep.subr.mxu0 0.0
    %1767 = vmatpush1.msra.mxu0 0.0
    %1768 = vmatprep.subr.mxu0 0.0
    %1769 = vmatpush1.msra.mxu0 0.0
    %1770 = vmatprep.subr.mxu0 0.0
    %1771 = vmatpush1.msra.mxu0 0.0
    %1772 = vmatprep.subr.mxu0 0.0
    %1773 = vmatpush1.msra.mxu0 0.0
    %1774 = vmatprep.subr.mxu0 0.0
    %1775 = vmatpush1.msra.mxu0 0.0
    %1776 = vmatprep.subr.mxu0 0.0
    %1777 = vmatpush1.msra.mxu0 0.0
    %1778 = vmatprep.subr.mxu0 0.0
    %1779 = vmatpush1.msra.mxu0 0.0
    %1780 = vmatprep.subr.mxu0 0.0
    %1781 = vmatpush1.msra.mxu0 0.0
    %1782 = vmatprep.subr.mxu0 0.0
    %1783 = vmatpush1.msra.mxu0 0.0
    %1784 = vmatprep.subr.mxu0 0.0
    %1785 = vmatpush1.msra.mxu0 0.0
    %1786 = vmatprep.subr.mxu0 0.0
    %1787 = vmatpush1.msra.mxu0 0.0
    %1788 = vmatprep.subr.mxu0 0.0
    %1789 = vmatpush1.msra.mxu0 0.0
    %1790 = vmatprep.subr.mxu0 0.0
    %1791 = vmatpush1.msra.mxu0 0.0
    %1792 = vmatprep.subr.mxu0 0.0
    %1793 = vmatpush1.msra.mxu0 0.0
    %1794 = vmatprep.subr.mxu0 0.0
    %1795 = vmatpush1.msra.mxu0 0.0
    %1796 = vmatprep.subr.mxu0 0.0
    %1797 = vmatpush1.msra.mxu0 0.0
    %1798 = vmatprep.subr.mxu0 0.0
    %1799 = vmatpush1.msra.mxu0 0.0
    %1800 = vmatprep.subr.mxu0 0.0
    %1801 = vmatpush1.msra.mxu0 0.0
    %1802 = vmatprep.subr.mxu0 0.0
    %1803 = vmatpush1.msra.mxu0 0.0
    %1804 = vmatprep.subr.mxu0 0.0
    %1805 = vmatpush1.msra.mxu0 0.0
    %1806 = vmatprep.subr.mxu0 0.0
    %1807 = vmatpush1.msra.mxu0 0.0
    %1808 = vmatprep.subr.mxu0 0.0
    %1809 = vmatpush1.msra.mxu0 0.0
    %1810 = vmatprep.subr.mxu0 0.0
    %1811 = vmatpush1.msra.mxu0 0.0
    %1812 = vmatprep.subr.mxu0 0.0
    %1813 = vmatpush1.msra.mxu0 0.0
    %1814 = vmatprep.subr.mxu0 0.0
    %1815 = vmatpush1.msra.mxu0 0.0
    %1816 = vmatprep.mubr.f32.mxu0 0.0
    %1817 = vmatmul.mubr.f32.gmra.mrb[0].mxu0 %v1750
    %v1818 = vpop.f32.mrb[0].mxu0
    %v1819 = vadd.f32 0.0, %v1818
    %v1820 = vpop.f32.mrb[0].mxu0
    %v1821 = vadd.f32 0.0, %v1820
    %1822 = vdwg.mxu0
    %v1823 = vld [vmem:[%s9] sm:$0xff]
    %v1824 = vld [vmem:[%s9 + $0x8] sm:$0xff]
    %v1825 = vld [vmem:[%s9 + $0x10] sm:$0xff]
    %v1826 = vld [vmem:[%s9 + $0x18] sm:$0xff]
    %v1827 = vld [vmem:[%s9 + $0x20] sm:$0xff]
    %v1828 = vld [vmem:[%s9 + $0x28] sm:$0xff]
    %v1829 = vld [vmem:[%s9 + $0x30] sm:$0xff]
    %v1830 = vld [vmem:[%s9 + $0x38] sm:$0xff]
    %v1831 = vld [vmem:[%s9 + $0x40] sm:$0xff]
    %v1832 = vld [vmem:[%s9 + $0x48] sm:$0xff]
    %v1833 = vld [vmem:[%s9 + $0x50] sm:$0xff]
    %v1834 = vld [vmem:[%s9 + $0x58] sm:$0xff]
    %v1835 = vld [vmem:[%s9 + $0x60] sm:$0xff]
    %v1836 = vld [vmem:[%s9 + $0x68] sm:$0xff]
    %v1837 = vld [vmem:[%s9 + $0x70] sm:$0xff]
    %v1838 = vld [vmem:[%s9 + $0x78] sm:$0xff]
    %v1839 = vld [vmem:[%s9 + $0x80] sm:$0xff]
    %v1840 = vld [vmem:[%s9 + $0x88] sm:$0xff]
    %v1842 = vsel %vm1748, %v1821, 0
    %1844 = vmatprep.subr.mxu0 0.0
    %1845 = vmatpush1.msra.mxu0 %v1823
    %1846 = vmatprep.subr.mxu0 0.0
    %1847 = vmatpush1.msra.mxu0 %v1824
    %1848 = vmatprep.subr.mxu0 0.0
    %1849 = vmatpush1.msra.mxu0 %v1825
    %1850 = vmatprep.subr.mxu0 0.0
    %1851 = vmatpush1.msra.mxu0 %v1826
    %1852 = vmatprep.subr.mxu0 0.0
    %1853 = vmatpush1.msra.mxu0 %v1827
    %1854 = vmatprep.subr.mxu0 0.0
    %1855 = vmatpush1.msra.mxu0 %v1828
    %1856 = vmatprep.subr.mxu0 0.0
    %1857 = vmatpush1.msra.mxu0 %v1829
    %1858 = vmatprep.subr.mxu0 0.0
    %1859 = vmatpush1.msra.mxu0 %v1830
    %1860 = vmatprep.subr.mxu0 0.0
    %1861 = vmatpush1.msra.mxu0 %v1831
    %1862 = vmatprep.subr.mxu0 0.0
    %1863 = vmatpush1.msra.mxu0 %v1832
    %1864 = vmatprep.subr.mxu0 0.0
    %1865 = vmatpush1.msra.mxu0 %v1833
    %1866 = vmatprep.subr.mxu0 0.0
    %1867 = vmatpush1.msra.mxu0 %v1834
    %1868 = vmatprep.subr.mxu0 0.0
    %1869 = vmatpush1.msra.mxu0 %v1835
    %1870 = vmatprep.subr.mxu0 0.0
    %1871 = vmatpush1.msra.mxu0 %v1836
    %1872 = vmatprep.subr.mxu0 0.0
    %1873 = vmatpush1.msra.mxu0 %v1837
    %1874 = vmatprep.subr.mxu0 0.0
    %1875 = vmatpush1.msra.mxu0 %v1838
    %1876 = vmatprep.subr.mxu0 0.0
    %1877 = vmatpush1.msra.mxu0 %v1839
    %1878 = vmatprep.subr.mxu0 0.0
    %1879 = vmatpush1.msra.mxu0 %v1840
    %1880 = vmatprep.subr.mxu0 0.0
    %1881 = vmatpush1.msra.mxu0 0.0
    %1882 = vmatprep.subr.mxu0 0.0
    %1883 = vmatpush1.msra.mxu0 0.0
    %1884 = vmatprep.subr.mxu0 0.0
    %1885 = vmatpush1.msra.mxu0 0.0
    %1886 = vmatprep.subr.mxu0 0.0
    %1887 = vmatpush1.msra.mxu0 0.0
    %1888 = vmatprep.subr.mxu0 0.0
    %1889 = vmatpush1.msra.mxu0 0.0
    %1890 = vmatprep.subr.mxu0 0.0
    %1891 = vmatpush1.msra.mxu0 0.0
    %1892 = vmatprep.subr.mxu0 0.0
    %1893 = vmatpush1.msra.mxu0 0.0
    %1894 = vmatprep.subr.mxu0 0.0
    %1895 = vmatpush1.msra.mxu0 0.0
    %1896 = vmatprep.subr.mxu0 0.0
    %1897 = vmatpush1.msra.mxu0 0.0
    %1898 = vmatprep.subr.mxu0 0.0
    %1899 = vmatpush1.msra.mxu0 0.0
    %1900 = vmatprep.subr.mxu0 0.0
    %1901 = vmatpush1.msra.mxu0 0.0
    %1902 = vmatprep.subr.mxu0 0.0
    %1903 = vmatpush1.msra.mxu0 0.0
    %1904 = vmatprep.subr.mxu0 0.0
    %1905 = vmatpush1.msra.mxu0 0.0
    %1906 = vmatprep.subr.mxu0 0.0
    %1907 = vmatpush1.msra.mxu0 0.0
    %1908 = vmatprep.mubr.f32.mxu0 %v1842
    %1909 = vmatmul.mubr.f32.gmra.mrb[0].mxu0 %v1819
    %v1910 = vpop.f32.mrb[0].mxu0
    %v1911 = vadd.f32 0.0, %v1910
    %v1912 = vpop.f32.mrb[0].mxu0
    %1913 = vdwg.mxu0
    %vm1914 = vcmask 254976
    %1915 = vst.msk [vmem:[#allocation2] sm:$0x3] %vm1914, %v1911
    // Predicated region
    $region42: #{vocos_forward.1} parent=1 // pred_check
      _
    $region43: #{vocos_forward.1} parent=1 // pred_check_branch
      %1917 = sbr.rel (0) target = $region45
    $region44: #{vocos_forward.1} parent=1 // pred_region
      %s1919 = ssub.s32 32, 32
      %1920 = vsyncadd [#allocation3], %s1919
      %s1922 = sshll.u32 [#allocation2], 4
      %s1923 = int_to_ptr.vmem [resolvable:$true] %s1922
      %1925 = dma.vmem_to_hbm [thread:$0]  %s1923, 32, %s10, [#allocation3]
    $region45: #{vocos_forward.1} parent=1 // pred_fallthru
      _
    // Predicated region
    $region46: #{vocos_forward.1} parent=1 // pred_check
      _
    $region47: #{vocos_forward.1} parent=1 // pred_check_branch
      %1927 = sbr.rel (0) target = $region49
    $region48: #{vocos_forward.1} parent=1 // pred_region
      %1928 = dma.done [#allocation3], 32
    $region49: #{vocos_forward.1} parent=1 // pred_fallthru
      _
    %1929 = vsyncpa [#allocation3], 1

</llo_original>
